<compile_context>
chip_gen: v7x
topology: tpu7x:2x2x1
jax: 0.10.0
libtpu: 0.0.40
codegen_flags: <defaults>
</compile_context>

<pallas_src>
import functools

import jax
import jax.numpy as jnp
from jax.experimental import pallas as pl
from jax.experimental.pallas import tpu as pltpu


def _round_up(a, b):
    return ((a + b - 1) // b) * b


# ----------------------------- Pallas kernel -----------------------------

def _mcvcr_kernel(z_dim,
                  x_ref, eps_ref,
                  w1_ref, b1_ref, w2_ref, b2_ref, w3_ref, b3_ref,
                  wh_ref, bh_ref,
                  w4_ref, b4_ref, w5_ref, b5_ref,
                  mu_ref, sig_ref, z_ref, p_ref):
    f32 = jnp.float32

    def dense(v, w, b):
        # bf16 x bf16 MXU matmul with f32 accumulation; bias add in f32.
        acc = jnp.dot(v.astype(w.dtype), w, preferred_element_type=f32)
        return acc + b.astype(f32)

    x = x_ref[0]                                              # (bm, x_dim_max)

    # encoder: fc1 -> relu -> fc2 -> relu -> fc3 -> relu
    h = jnp.maximum(dense(x, w1_ref[0], b1_ref[0]), 0.0)
    h = jnp.maximum(dense(h, w2_ref[0], b2_ref[0]), 0.0)
    h = jnp.maximum(dense(h, w3_ref[0], b3_ref[0]), 0.0)

    # fused mu|log_var head (single matmul, then static lane slices)
    head = dense(h, wh_ref[0], bh_ref[0])                     # (bm, 2*z_dim)
    mu = head[:, :z_dim]
    sigma = jnp.exp(0.5 * head[:, z_dim:])

    # reparameterized sample: z = mu + sigma * eps   (elementwise in f32)
    z = mu + sigma * eps_ref[0].astype(f32)

    # shared classifier: fc4 -> relu -> fc5 -> softmax(dim=1)
    h4 = jnp.maximum(dense(z, w4_ref[...], b4_ref[...]), 0.0)
    logits = dense(h4, w5_ref[...], b5_ref[...])
    m = jnp.max(logits, axis=-1, keepdims=True)
    e = jnp.exp(logits - m)
    p = e * pl.reciprocal(jnp.sum(e, axis=-1, keepdims=True), approx=True)

    # natural-width outputs — no zero-padding, no concatenate
    mu_ref[0] = mu
    sig_ref[0] = sigma
    z_ref[0] = z
    p_ref[0] = p


# ----------------------------- Wrapper -----------------------------

def mcvcr_pallas_forward(x_stack, eps_stack, enc, cls, *, block_m=2048):
    """x_stack: (n_ch, N, x_dim_max) bf16 (feature-padded, stacked channels).
       eps_stack: (n_ch, N, z_dim) f32.
       Returns (mu, sigma, z, pyz), each (n_ch, N, ...) f32."""
    n_ch, n, x_dim_max = x_stack.shape
    z_dim = eps_stack.shape[-1]
    h4_dim, n_lab = cls["w5"].shape
    h1 = enc["w1"].shape[2]
    h2 = enc["w2"].shape[2]
    h3 = enc["w3"].shape[2]

    # big batch tile, ragged last tile handled via zero padding (sliced off).
    bm = min(_round_up(block_m, 8), _round_up(n, 8))
    n_pad = _round_up(n, bm)
    if n_pad != n:
        x_stack = jnp.pad(x_stack, ((0, 0), (0, n_pad - n), (0, 0)))
        eps_stack = jnp.pad(eps_stack, ((0, 0), (0, n_pad - n), (0, 0)))

    n_tiles = n_pad // bm
    # batch-tile axis first so megacore (v7x) shards the large axis.
    grid = (n_tiles, n_ch)

    def batch_spec(width):
        return pl.BlockSpec((1, bm, width), lambda i, c: (c, i, 0))

    def chan_spec(arr):                         # per-channel stacked weights
        return pl.BlockSpec((1,) + arr.shape[1:], lambda i, c: (c, 0, 0))

    def shared_spec(arr):                       # shared classifier weights
        return pl.BlockSpec(arr.shape, lambda i, c: (0, 0))

    in_specs = [
        batch_spec(x_dim_max),
        batch_spec(z_dim),
        chan_spec(enc["w1"]), chan_spec(enc["b1"]),
        chan_spec(enc["w2"]), chan_spec(enc["b2"]),
        chan_spec(enc["w3"]), chan_spec(enc["b3"]),
        chan_spec(enc["wh"]), chan_spec(enc["bh"]),
        shared_spec(cls["w4"]), shared_spec(cls["b4"]),
        shared_spec(cls["w5"]), shared_spec(cls["b5"]),
    ]
    # Four natural-width outputs (block last dim == full array last dim, so the
    # (8,128) divisibility rule does not apply).
    out_specs = [batch_spec(z_dim), batch_spec(z_dim),
                 batch_spec(z_dim), batch_spec(n_lab)]
    out_shape = (
        jax.ShapeDtypeStruct((n_ch, n_pad, z_dim), jnp.float32),
        jax.ShapeDtypeStruct((n_ch, n_pad, z_dim), jnp.float32),
        jax.ShapeDtypeStruct((n_ch, n_pad, z_dim), jnp.float32),
        jax.ShapeDtypeStruct((n_ch, n_pad, n_lab), jnp.float32),
    )

    # Advisory cost estimate for XLA's scheduler.
    flops = 2 * n_ch * n_pad * (
        x_dim_max * h1 + h1 * h2 + h2 * h3 + h3 * 2 * z_dim
        + z_dim * h4_dim + h4_dim * n_lab)
    transcendentals = n_ch * n_pad * (z_dim + n_lab)
    weight_bytes = (sum(int(a.size) * a.dtype.itemsize for a in enc.values())
                    + sum(int(a.size) * a.dtype.itemsize for a in cls.values()))
    bytes_accessed = int(
        x_stack.size * x_stack.dtype.itemsize
        + eps_stack.size * eps_stack.dtype.itemsize
        + weight_bytes
        + n_ch * n_pad * (3 * z_dim + n_lab) * 4)

    fn = pl.pallas_call(
        functools.partial(_mcvcr_kernel, z_dim),
        out_shape=out_shape,
        grid_spec=pltpu.PrefetchScalarGridSpec(
            num_scalar_prefetch=0,
            grid=grid,
            in_specs=in_specs,
            out_specs=out_specs,
        ),
        compiler_params=pltpu.CompilerParams(
            dimension_semantics=("parallel", "parallel")),
        cost_estimate=pl.CostEstimate(flops=flops,
                                      transcendentals=transcendentals,
                                      bytes_accessed=bytes_accessed),
    )
    mu, sigma, z, pyz = fn(x_stack, eps_stack,
                           enc["w1"], enc["b1"], enc["w2"], enc["b2"],
                           enc["w3"], enc["b3"], enc["wh"], enc["bh"],
                           cls["w4"], cls["b4"], cls["w5"], cls["b5"])

    if n_pad != n:
        mu, sigma, z, pyz = (a[:, :n] for a in (mu, sigma, z, pyz))
    return mu, sigma, z, pyz


# ----------------------------- Parameter setup -----------------------------

def _init_linear(key, fan_in, fan_out, w_dtype):
    # PyTorch-style init: U(-1/sqrt(fan_in), 1/sqrt(fan_in)).
    kw, kb = jax.random.split(key)
    bound = 1.0 / jnp.sqrt(jnp.float32(fan_in))
    w = jax.random.uniform(kw, (fan_in, fan_out), jnp.float32, -bound, bound)
    b = jax.random.uniform(kb, (1, fan_out), jnp.float32, -bound, bound)
    return w.astype(w_dtype), b            # weights bf16 (MXU), biases f32


def init_mcvcr_params(key, x_dims, z_dim, n_labels, h_dim1, h_dim2, h_dim3,
                      w_dtype=jnp.bfloat16):
    n_lab = max(n_labels)
    n_channels = len(x_dims)
    keys = jax.random.split(key, 5 * n_channels + 2)
    per_channel = []
    for ch in range(n_channels):
        k = keys[5 * ch:5 * ch + 5]
        w1, b1 = _init_linear(k[0], x_dims[ch], h_dim1, w_dtype)
        w2, b2 = _init_linear(k[1], h_dim1, h_dim2, w_dtype)
        w3, b3 = _init_linear(k[2], h_dim2, h_dim3, w_dtype)
        wmu, bmu = _init_linear(k[3], h_dim3, z_dim, w_dtype)
        wlv, blv = _init_linear(k[4], h_dim3, z_dim, w_dtype)
        per_channel.append(dict(w1=w1, b1=b1, w2=w2, b2=b2, w3=w3, b3=b3,
                                wmu=wmu, bmu=bmu, wlv=wlv, blv=blv))
    w4, b4 = _init_linear(keys[-2], z_dim, n_lab // 2, w_dtype)
    w5, b5 = _init_linear(keys[-1], n_lab // 2, n_lab, w_dtype)
    cls = dict(w4=w4, b4=b4, w5=w5, b5=b5)
    return per_channel, cls


def pack_encoder_params(per_channel, x_dim_max):
    """Stack per-channel encoder weights along a channel axis; zero-pad fc1
    input dims to x_dim_max (exact, since padded x columns are zero); fuse
    mu|log_var heads into one matmul."""
    def stack(name):
        return jnp.stack([p[name] for p in per_channel])
    w1 = jnp.stack([
        jnp.pad(p["w1"], ((0, x_dim_max - p["w1"].shape[0]), (0, 0)))
        for p in per_channel])
    wh = jnp.stack([jnp.concatenate([p["wmu"], p["wlv"]], axis=1)
                    for p in per_channel])
    bh = jnp.stack([jnp.concatenate([p["bmu"], p["blv"]], axis=1)
                    for p in per_channel])
    return dict(w1=w1, b1=stack("b1"), w2=stack("w2"), b2=stack("b2"),
                w3=stack("w3"), b3=stack("b3"), wh=wh, bh=bh)


def mcvcr_forward(xs, y, eps_list, per_channel_params, cls_params, *,
                  block_m=2048):
    """Mirror of MCVCR.forward: returns {'x','y','qzx','z','pyz'}.
    qzx is returned as a list of (loc, scale) tuples (Normal parameters)."""
    n_ch = len(xs)
    x_dim_max = max(x.shape[1] for x in xs)
    w_dtype = per_channel_params[0]["w1"].dtype
    x_stack = jnp.stack([
        jnp.pad(x, ((0, 0), (0, x_dim_max - x.shape[1]))) for x in xs
    ]).astype(w_dtype)
    eps_stack = jnp.stack(eps_list)     # f32; only used in elementwise math
    enc = pack_encoder_params(per_channel_params, x_dim_max)

    mu, sigma, z, pyz = mcvcr_pallas_forward(
        x_stack, eps_stack, enc, cls_params, block_m=block_m)

    qzx = [(mu[ch], sigma[ch]) for ch in range(n_ch)]
    zs = [z[ch] for ch in range(n_ch)]
    pyzs = [pyz[ch] for ch in range(n_ch)]
    return {"x": xs, "y": y, "qzx": qzx, "z": zs, "pyz": pyzs}


# ----------------------------- Reference (pure JAX, f32) -----------------------------

def _ref_channel(x, eps, cp, cl):
    f = lambda a: a.astype(jnp.float32)
    relu = lambda v: jnp.maximum(v, 0.0)
    h = relu(x @ f(cp["w1"]) + cp["b1"])
    h = relu(h @ f(cp["w2"]) + cp["b2"])
    h = relu(h @ f(cp["w3"]) + cp["b3"])
    mu = h @ f(cp["wmu"]) + cp["bmu"]
    sigma = jnp.exp(0.5 * (h @ f(cp["wlv"]) + cp["blv"]))
    z = mu + sigma * eps
    h4 = relu(z @ f(cl["w4"]) + cl["b4"])
    p = jax.nn.softmax(h4 @ f(cl["w5"]) + cl["b5"], axis=-1)
    return mu, sigma, z, p


# ----------------------------- Main -----------------------------

if __name__ == "__main__":
    # Small shapes consistent with MCVCR.__init__
    x_dims = (16, 24)          # 2 channels with different feature dims
    z_dim = 8
    n_labels = [4, 4]          # -> self.n_labels = 4, fc4 out = 2
    h_dim1, h_dim2, h_dim3 = 32, 32, 16
    batch = 50                 # deliberately NOT a multiple of 8 (ragged tile)

    key = jax.random.PRNGKey(0)
    kp, kx0, kx1, ke0, ke1, ky = jax.random.split(key, 6)

    per_channel_params, cls_params = init_mcvcr_params(
        kp, x_dims, z_dim, n_labels, h_dim1, h_dim2, h_dim3)

    xs = [jax.random.normal(kx0, (batch, x_dims[0]), jnp.float32),
          jax.random.normal(kx1, (batch, x_dims[1]), jnp.float32)]
    eps_list = [jax.random.normal(ke0, (batch, z_dim), jnp.float32),
                jax.random.normal(ke1, (batch, z_dim), jnp.float32)]
    # one-hot labels per channel (passed through untouched, like the module)
    lab_idx = jax.random.randint(ky, (len(x_dims), batch), 0, max(n_labels))
    y = [jax.nn.one_hot(lab_idx[ch], max(n_labels), dtype=jnp.float32)
         for ch in range(len(x_dims))]

    out = mcvcr_forward(xs, y, eps_list, per_channel_params, cls_params)
    jax.block_until_ready(out)

    # correctness check vs pure-JAX f32 reference (bf16 MXU path -> loose tol)
    ok = True
    tol = dict(atol=5e-2, rtol=5e-2)
    for ch in range(len(x_dims)):
        r_mu, r_sig, r_z, r_p = _ref_channel(
            xs[ch], eps_list[ch], per_channel_params[ch], cls_params)
        k_mu, k_sig = out["qzx"][ch]
        ok &= bool(jnp.allclose(k_mu, r_mu, **tol))
        ok &= bool(jnp.allclose(k_sig, r_sig, **tol))
        ok &= bool(jnp.allclose(out["z"][ch], r_z, **tol))
        ok &= bool(jnp.allclose(out["pyz"][ch], r_p, **tol))
    assert ok, "Pallas kernel output mismatch vs reference"

    print("KERNEL_OK")
</pallas_src>

<mosaic_0001>
module attributes {stable_mosaic.version = 11 : i64} {
  func.func @_mcvcr_kernel(%arg0: i32, %arg1: i32, %arg2: memref<1x56x24xbf16, #tpu.memory_space<vmem>>, %arg3: memref<1x56x8xf32, #tpu.memory_space<vmem>>, %arg4: memref<1x24x32xbf16, #tpu.memory_space<vmem>>, %arg5: memref<1x1x32xf32, #tpu.memory_space<vmem>>, %arg6: memref<1x32x32xbf16, #tpu.memory_space<vmem>>, %arg7: memref<1x1x32xf32, #tpu.memory_space<vmem>>, %arg8: memref<1x32x16xbf16, #tpu.memory_space<vmem>>, %arg9: memref<1x1x16xf32, #tpu.memory_space<vmem>>, %arg10: memref<1x16x16xbf16, #tpu.memory_space<vmem>>, %arg11: memref<1x1x16xf32, #tpu.memory_space<vmem>>, %arg12: memref<8x2xbf16, #tpu.memory_space<vmem>>, %arg13: memref<1x2xf32, #tpu.memory_space<vmem>>, %arg14: memref<2x4xbf16, #tpu.memory_space<vmem>>, %arg15: memref<1x4xf32, #tpu.memory_space<vmem>>, %arg16: memref<1x56x8xf32, #tpu.memory_space<vmem>>, %arg17: memref<1x56x8xf32, #tpu.memory_space<vmem>>, %arg18: memref<1x56x8xf32, #tpu.memory_space<vmem>>, %arg19: memref<1x56x4xf32, #tpu.memory_space<vmem>>) attributes {dimension_semantics = [#tpu.dimension_semantics<parallel>, #tpu.dimension_semantics<parallel>], iteration_bounds = array<i64: 1, 2>, scalar_prefetch = 0 : i64, scratch_operands = 0 : i64, tpu.core_type = #tpu.core_type<tc>, window_params = [{transform_indices = @transform_0, window_bounds = array<i64: 1, 56, 24>}, {transform_indices = @transform_1, window_bounds = array<i64: 1, 56, 8>}, {transform_indices = @transform_2, window_bounds = array<i64: 1, 24, 32>}, {transform_indices = @transform_3, window_bounds = array<i64: 1, 1, 32>}, {transform_indices = @transform_4, window_bounds = array<i64: 1, 32, 32>}, {transform_indices = @transform_5, window_bounds = array<i64: 1, 1, 32>}, {transform_indices = @transform_6, window_bounds = array<i64: 1, 32, 16>}, {transform_indices = @transform_7, window_bounds = array<i64: 1, 1, 16>}, {transform_indices = @transform_8, window_bounds = array<i64: 1, 16, 16>}, {transform_indices = @transform_9, window_bounds = array<i64: 1, 1, 16>}, {pipeline_mode = #tpu.pipeline_mode<synchronous>, transform_indices = @transform_10, window_bounds = array<i64: 8, 2>}, {pipeline_mode = #tpu.pipeline_mode<synchronous>, transform_indices = @transform_11, window_bounds = array<i64: 1, 2>}, {pipeline_mode = #tpu.pipeline_mode<synchronous>, transform_indices = @transform_12, window_bounds = array<i64: 2, 4>}, {pipeline_mode = #tpu.pipeline_mode<synchronous>, transform_indices = @transform_13, window_bounds = array<i64: 1, 4>}, {transform_indices = @transform_14, window_bounds = array<i64: 1, 56, 8>}, {transform_indices = @transform_15, window_bounds = array<i64: 1, 56, 8>}, {transform_indices = @transform_16, window_bounds = array<i64: 1, 56, 8>}, {transform_indices = @transform_17, window_bounds = array<i64: 1, 56, 4>}]} {
    %c0 = arith.constant 0 : index
    %c0_0 = arith.constant 0 : index
    %c0_1 = arith.constant 0 : index
    %0 = vector.load %arg2[%c0, %c0_0, %c0_1] : memref<1x56x24xbf16, #tpu.memory_space<vmem>>, vector<1x56x24xbf16>
    %1 = vector.shape_cast %0 : vector<1x56x24xbf16> to vector<56x24xbf16>
    %c0_2 = arith.constant 0 : index
    %c0_3 = arith.constant 0 : index
    %c0_4 = arith.constant 0 : index
    %2 = vector.load %arg4[%c0_2, %c0_3, %c0_4] : memref<1x24x32xbf16, #tpu.memory_space<vmem>>, vector<1x24x32xbf16>
    %3 = vector.shape_cast %2 : vector<1x24x32xbf16> to vector<24x32xbf16>
    %c0_5 = arith.constant 0 : index
    %c0_6 = arith.constant 0 : index
    %c0_7 = arith.constant 0 : index
    %4 = vector.load %arg5[%c0_5, %c0_6, %c0_7] : memref<1x1x32xf32, #tpu.memory_space<vmem>>, vector<1x1x32xf32>
    %5 = vector.shape_cast %4 : vector<1x1x32xf32> to vector<1x32xf32>
    %cst = arith.constant dense<0.000000e+00> : vector<56x32xf32>
    %6 = tpu.matmul %1, %3, %cst {dimension_numbers = #tpu.dot_dimension_numbers<[1], [0], [0], [1], [0, 0, 1, 1], [], []>} : vector<56x24xbf16>, vector<24x32xbf16>, vector<56x32xf32> -> vector<56x32xf32>
    %7 = vector.broadcast %5 : vector<1x32xf32> to vector<56x32xf32>
    %8 = arith.addf %6, %7 : vector<56x32xf32>
    %cst_8 = arith.constant 0.000000e+00 : f32
    %9 = vector.broadcast %cst_8 : f32 to vector<56x32xf32>
    %10 = arith.maximumf %8, %9 : vector<56x32xf32>
    %c0_9 = arith.constant 0 : index
    %c0_10 = arith.constant 0 : index
    %c0_11 = arith.constant 0 : index
    %11 = vector.load %arg6[%c0_9, %c0_10, %c0_11] : memref<1x32x32xbf16, #tpu.memory_space<vmem>>, vector<1x32x32xbf16>
    %12 = vector.shape_cast %11 : vector<1x32x32xbf16> to vector<32x32xbf16>
    %c0_12 = arith.constant 0 : index
    %c0_13 = arith.constant 0 : index
    %c0_14 = arith.constant 0 : index
    %13 = vector.load %arg7[%c0_12, %c0_13, %c0_14] : memref<1x1x32xf32, #tpu.memory_space<vmem>>, vector<1x1x32xf32>
    %14 = vector.shape_cast %13 : vector<1x1x32xf32> to vector<1x32xf32>
    %15 = arith.truncf %10 : vector<56x32xf32> to vector<56x32xbf16>
    %cst_15 = arith.constant dense<0.000000e+00> : vector<56x32xf32>
    %16 = tpu.matmul %15, %12, %cst_15 {dimension_numbers = #tpu.dot_dimension_numbers<[1], [0], [0], [1], [0, 0, 1, 1], [], []>} : vector<56x32xbf16>, vector<32x32xbf16>, vector<56x32xf32> -> vector<56x32xf32>
    %17 = vector.broadcast %14 : vector<1x32xf32> to vector<56x32xf32>
    %18 = arith.addf %16, %17 : vector<56x32xf32>
    %cst_16 = arith.constant 0.000000e+00 : f32
    %19 = vector.broadcast %cst_16 : f32 to vector<56x32xf32>
    %20 = arith.maximumf %18, %19 : vector<56x32xf32>
    %c0_17 = arith.constant 0 : index
    %c0_18 = arith.constant 0 : index
    %c0_19 = arith.constant 0 : index
    %21 = vector.load %arg8[%c0_17, %c0_18, %c0_19] : memref<1x32x16xbf16, #tpu.memory_space<vmem>>, vector<1x32x16xbf16>
    %22 = vector.shape_cast %21 : vector<1x32x16xbf16> to vector<32x16xbf16>
    %c0_20 = arith.constant 0 : index
    %c0_21 = arith.constant 0 : index
    %c0_22 = arith.constant 0 : index
    %23 = vector.load %arg9[%c0_20, %c0_21, %c0_22] : memref<1x1x16xf32, #tpu.memory_space<vmem>>, vector<1x1x16xf32>
    %24 = vector.shape_cast %23 : vector<1x1x16xf32> to vector<1x16xf32>
    %25 = arith.truncf %20 : vector<56x32xf32> to vector<56x32xbf16>
    %cst_23 = arith.constant dense<0.000000e+00> : vector<56x16xf32>
    %26 = tpu.matmul %25, %22, %cst_23 {dimension_numbers = #tpu.dot_dimension_numbers<[1], [0], [0], [1], [0, 0, 1, 1], [], []>} : vector<56x32xbf16>, vector<32x16xbf16>, vector<56x16xf32> -> vector<56x16xf32>
    %27 = vector.broadcast %24 : vector<1x16xf32> to vector<56x16xf32>
    %28 = arith.addf %26, %27 : vector<56x16xf32>
    %cst_24 = arith.constant 0.000000e+00 : f32
    %29 = vector.broadcast %cst_24 : f32 to vector<56x16xf32>
    %30 = arith.maximumf %28, %29 : vector<56x16xf32>
    %c0_25 = arith.constant 0 : index
    %c0_26 = arith.constant 0 : index
    %c0_27 = arith.constant 0 : index
    %31 = vector.load %arg10[%c0_25, %c0_26, %c0_27] : memref<1x16x16xbf16, #tpu.memory_space<vmem>>, vector<1x16x16xbf16>
    %32 = vector.shape_cast %31 : vector<1x16x16xbf16> to vector<16x16xbf16>
    %c0_28 = arith.constant 0 : index
    %c0_29 = arith.constant 0 : index
    %c0_30 = arith.constant 0 : index
    %33 = vector.load %arg11[%c0_28, %c0_29, %c0_30] : memref<1x1x16xf32, #tpu.memory_space<vmem>>, vector<1x1x16xf32>
    %34 = vector.shape_cast %33 : vector<1x1x16xf32> to vector<1x16xf32>
    %35 = arith.truncf %30 : vector<56x16xf32> to vector<56x16xbf16>
    %cst_31 = arith.constant dense<0.000000e+00> : vector<56x16xf32>
    %36 = tpu.matmul %35, %32, %cst_31 {dimension_numbers = #tpu.dot_dimension_numbers<[1], [0], [0], [1], [0, 0, 1, 1], [], []>} : vector<56x16xbf16>, vector<16x16xbf16>, vector<56x16xf32> -> vector<56x16xf32>
    %37 = vector.broadcast %34 : vector<1x16xf32> to vector<56x16xf32>
    %38 = arith.addf %36, %37 : vector<56x16xf32>
    %39 = vector.extract_strided_slice %38 {offsets = [0, 0], sizes = [56, 8], strides = [1, 1]} : vector<56x16xf32> to vector<56x8xf32>
    %40 = vector.extract_strided_slice %38 {offsets = [0, 8], sizes = [56, 8], strides = [1, 1]} : vector<56x16xf32> to vector<56x8xf32>
    %cst_32 = arith.constant 5.000000e-01 : f32
    %41 = vector.broadcast %cst_32 : f32 to vector<56x8xf32>
    %42 = arith.mulf %41, %40 : vector<56x8xf32>
    %43 = math.exp %42 : vector<56x8xf32>
    %c0_33 = arith.constant 0 : index
    %c0_34 = arith.constant 0 : index
    %c0_35 = arith.constant 0 : index
    %44 = vector.load %arg3[%c0_33, %c0_34, %c0_35] : memref<1x56x8xf32, #tpu.memory_space<vmem>>, vector<1x56x8xf32>
    %45 = vector.shape_cast %44 : vector<1x56x8xf32> to vector<56x8xf32>
    %46 = arith.mulf %43, %45 : vector<56x8xf32>
    %47 = arith.addf %39, %46 : vector<56x8xf32>
    %c0_36 = arith.constant 0 : index
    %c0_37 = arith.constant 0 : index
    %48 = vector.load %arg12[%c0_36, %c0_37] : memref<8x2xbf16, #tpu.memory_space<vmem>>, vector<8x2xbf16>
    %c0_38 = arith.constant 0 : index
    %c0_39 = arith.constant 0 : index
    %49 = vector.load %arg13[%c0_38, %c0_39] : memref<1x2xf32, #tpu.memory_space<vmem>>, vector<1x2xf32>
    %50 = arith.truncf %47 : vector<56x8xf32> to vector<56x8xbf16>
    %cst_40 = arith.constant dense<0.000000e+00> : vector<56x2xf32>
    %51 = tpu.matmul %50, %48, %cst_40 {dimension_numbers = #tpu.dot_dimension_numbers<[1], [0], [0], [1], [0, 0, 1, 1], [], []>} : vector<56x8xbf16>, vector<8x2xbf16>, vector<56x2xf32> -> vector<56x2xf32>
    %52 = vector.broadcast %49 : vector<1x2xf32> to vector<56x2xf32>
    %53 = arith.addf %51, %52 : vector<56x2xf32>
    %cst_41 = arith.constant 0.000000e+00 : f32
    %54 = vector.broadcast %cst_41 : f32 to vector<56x2xf32>
    %55 = arith.maximumf %53, %54 : vector<56x2xf32>
    %c0_42 = arith.constant 0 : index
    %c0_43 = arith.constant 0 : index
    %56 = vector.load %arg14[%c0_42, %c0_43] : memref<2x4xbf16, #tpu.memory_space<vmem>>, vector<2x4xbf16>
    %c0_44 = arith.constant 0 : index
    %c0_45 = arith.constant 0 : index
    %57 = vector.load %arg15[%c0_44, %c0_45] : memref<1x4xf32, #tpu.memory_space<vmem>>, vector<1x4xf32>
    %58 = arith.truncf %55 : vector<56x2xf32> to vector<56x2xbf16>
    %cst_46 = arith.constant dense<0.000000e+00> : vector<56x4xf32>
    %59 = tpu.matmul %58, %56, %cst_46 {dimension_numbers = #tpu.dot_dimension_numbers<[1], [0], [0], [1], [0, 0, 1, 1], [], []>} : vector<56x2xbf16>, vector<2x4xbf16>, vector<56x4xf32> -> vector<56x4xf32>
    %60 = vector.broadcast %57 : vector<1x4xf32> to vector<56x4xf32>
    %61 = arith.addf %59, %60 : vector<56x4xf32>
    %cst_47 = arith.constant dense<0xFF800000> : vector<56xf32>
    %62 = vector.multi_reduction <maximumf>, %61, %cst_47 [1] : vector<56x4xf32> to vector<56xf32>
    %63 = vector.shape_cast %62 : vector<56xf32> to vector<56x1xf32>
    %64 = vector.broadcast %63 : vector<56x1xf32> to vector<56x4xf32>
    %65 = arith.subf %61, %64 : vector<56x4xf32>
    %66 = math.exp %65 : vector<56x4xf32>
    %cst_48 = arith.constant dense<0.000000e+00> : vector<56xf32>
    %67 = vector.multi_reduction <add>, %66, %cst_48 [1] : vector<56x4xf32> to vector<56xf32>
    %68 = vector.shape_cast %67 : vector<56xf32> to vector<56x1xf32>
    %69 = tpu.reciprocal %68 {approx = true} : vector<56x1xf32> -> vector<56x1xf32>
    %70 = vector.broadcast %69 : vector<56x1xf32> to vector<56x4xf32>
    %71 = arith.mulf %66, %70 : vector<56x4xf32>
    %c0_49 = arith.constant 0 : index
    %c0_50 = arith.constant 0 : index
    %c0_51 = arith.constant 0 : index
    %72 = vector.load %arg16[%c0_49, %c0_50, %c0_51] : memref<1x56x8xf32, #tpu.memory_space<vmem>>, vector<1x56x8xf32>
    %73 = vector.shape_cast %72 : vector<1x56x8xf32> to vector<56x8xf32>
    %74 = vector.shape_cast %39 : vector<56x8xf32> to vector<1x56x8xf32>
    tpu.vector_store %arg16[%c0_49, %c0_50, %c0_51], %74 {strides = array<i32>} : memref<1x56x8xf32, #tpu.memory_space<vmem>>, vector<1x56x8xf32>,
    %c0_52 = arith.constant 0 : index
    %c0_53 = arith.constant 0 : index
    %c0_54 = arith.constant 0 : index
    %75 = vector.load %arg17[%c0_52, %c0_53, %c0_54] : memref<1x56x8xf32, #tpu.memory_space<vmem>>, vector<1x56x8xf32>
    %76 = vector.shape_cast %75 : vector<1x56x8xf32> to vector<56x8xf32>
    %77 = vector.shape_cast %43 : vector<56x8xf32> to vector<1x56x8xf32>
    tpu.vector_store %arg17[%c0_52, %c0_53, %c0_54], %77 {strides = array<i32>} : memref<1x56x8xf32, #tpu.memory_space<vmem>>, vector<1x56x8xf32>,
    %c0_55 = arith.constant 0 : index
    %c0_56 = arith.constant 0 : index
    %c0_57 = arith.constant 0 : index
    %78 = vector.load %arg18[%c0_55, %c0_56, %c0_57] : memref<1x56x8xf32, #tpu.memory_space<vmem>>, vector<1x56x8xf32>
    %79 = vector.shape_cast %78 : vector<1x56x8xf32> to vector<56x8xf32>
    %80 = vector.shape_cast %47 : vector<56x8xf32> to vector<1x56x8xf32>
    tpu.vector_store %arg18[%c0_55, %c0_56, %c0_57], %80 {strides = array<i32>} : memref<1x56x8xf32, #tpu.memory_space<vmem>>, vector<1x56x8xf32>,
    %c0_58 = arith.constant 0 : index
    %c0_59 = arith.constant 0 : index
    %c0_60 = arith.constant 0 : index
    %81 = vector.load %arg19[%c0_58, %c0_59, %c0_60] : memref<1x56x4xf32, #tpu.memory_space<vmem>>, vector<1x56x4xf32>
    %82 = vector.shape_cast %81 : vector<1x56x4xf32> to vector<56x4xf32>
    %83 = vector.shape_cast %71 : vector<56x4xf32> to vector<1x56x4xf32>
    tpu.vector_store %arg19[%c0_58, %c0_59, %c0_60], %83 {strides = array<i32>} : memref<1x56x4xf32, #tpu.memory_space<vmem>>, vector<1x56x4xf32>,
    return
  }
  func.func @transform_0(%arg0: i32, %arg1: i32) -> (i32, i32, i32) {
    %c0_i32 = arith.constant 0 : i32
    %c0_i32_0 = arith.constant 0 : i32
    return %arg1, %arg0, %c0_i32 : i32, i32, i32
  }
  func.func @transform_1(%arg0: i32, %arg1: i32) -> (i32, i32, i32) {
    %c0_i32 = arith.constant 0 : i32
    %c0_i32_0 = arith.constant 0 : i32
    return %arg1, %arg0, %c0_i32 : i32, i32, i32
  }
  func.func @transform_2(%arg0: i32, %arg1: i32) -> (i32, i32, i32) {
    %c0_i32 = arith.constant 0 : i32
    %c0_i32_0 = arith.constant 0 : i32
    %c0_i32_1 = arith.constant 0 : i32
    return %arg1, %c0_i32, %c0_i32_0 : i32, i32, i32
  }
  func.func @transform_3(%arg0: i32, %arg1: i32) -> (i32, i32, i32) {
    %c0_i32 = arith.constant 0 : i32
    %c0_i32_0 = arith.constant 0 : i32
    %c0_i32_1 = arith.constant 0 : i32
    return %arg1, %c0_i32, %c0_i32_0 : i32, i32, i32
  }
  func.func @transform_4(%arg0: i32, %arg1: i32) -> (i32, i32, i32) {
    %c0_i32 = arith.constant 0 : i32
    %c0_i32_0 = arith.constant 0 : i32
    %c0_i32_1 = arith.constant 0 : i32
    return %arg1, %c0_i32, %c0_i32_0 : i32, i32, i32
  }
  func.func @transform_5(%arg0: i32, %arg1: i32) -> (i32, i32, i32) {
    %c0_i32 = arith.constant 0 : i32
    %c0_i32_0 = arith.constant 0 : i32
    %c0_i32_1 = arith.constant 0 : i32
    return %arg1, %c0_i32, %c0_i32_0 : i32, i32, i32
  }
  func.func @transform_6(%arg0: i32, %arg1: i32) -> (i32, i32, i32) {
    %c0_i32 = arith.constant 0 : i32
    %c0_i32_0 = arith.constant 0 : i32
    %c0_i32_1 = arith.constant 0 : i32
    return %arg1, %c0_i32, %c0_i32_0 : i32, i32, i32
  }
  func.func @transform_7(%arg0: i32, %arg1: i32) -> (i32, i32, i32) {
    %c0_i32 = arith.constant 0 : i32
    %c0_i32_0 = arith.constant 0 : i32
    %c0_i32_1 = arith.constant 0 : i32
    return %arg1, %c0_i32, %c0_i32_0 : i32, i32, i32
  }
  func.func @transform_8(%arg0: i32, %arg1: i32) -> (i32, i32, i32) {
    %c0_i32 = arith.constant 0 : i32
    %c0_i32_0 = arith.constant 0 : i32
    %c0_i32_1 = arith.constant 0 : i32
    return %arg1, %c0_i32, %c0_i32_0 : i32, i32, i32
  }
  func.func @transform_9(%arg0: i32, %arg1: i32) -> (i32, i32, i32) {
    %c0_i32 = arith.constant 0 : i32
    %c0_i32_0 = arith.constant 0 : i32
    %c0_i32_1 = arith.constant 0 : i32
    return %arg1, %c0_i32, %c0_i32_0 : i32, i32, i32
  }
  func.func @transform_10(%arg0: i32, %arg1: i32) -> (i32, i32) {
    %c0_i32 = arith.constant 0 : i32
    %c0_i32_0 = arith.constant 0 : i32
    %c0_i32_1 = arith.constant 0 : i32
    return %c0_i32, %c0_i32_0 : i32, i32
  }
  func.func @transform_11(%arg0: i32, %arg1: i32) -> (i32, i32) {
    %c0_i32 = arith.constant 0 : i32
    %c0_i32_0 = arith.constant 0 : i32
    %c0_i32_1 = arith.constant 0 : i32
    return %c0_i32, %c0_i32_0 : i32, i32
  }
  func.func @transform_12(%arg0: i32, %arg1: i32) -> (i32, i32) {
    %c0_i32 = arith.constant 0 : i32
    %c0_i32_0 = arith.constant 0 : i32
    %c0_i32_1 = arith.constant 0 : i32
    return %c0_i32, %c0_i32_0 : i32, i32
  }
  func.func @transform_13(%arg0: i32, %arg1: i32) -> (i32, i32) {
    %c0_i32 = arith.constant 0 : i32
    %c0_i32_0 = arith.constant 0 : i32
    %c0_i32_1 = arith.constant 0 : i32
    return %c0_i32, %c0_i32_0 : i32, i32
  }
  func.func @transform_14(%arg0: i32, %arg1: i32) -> (i32, i32, i32) {
    %c0_i32 = arith.constant 0 : i32
    %c0_i32_0 = arith.constant 0 : i32
    return %arg1, %arg0, %c0_i32 : i32, i32, i32
  }
  func.func @transform_15(%arg0: i32, %arg1: i32) -> (i32, i32, i32) {
    %c0_i32 = arith.constant 0 : i32
    %c0_i32_0 = arith.constant 0 : i32
    return %arg1, %arg0, %c0_i32 : i32, i32, i32
  }
  func.func @transform_16(%arg0: i32, %arg1: i32) -> (i32, i32, i32) {
    %c0_i32 = arith.constant 0 : i32
    %c0_i32_0 = arith.constant 0 : i32
    return %arg1, %arg0, %c0_i32 : i32, i32, i32
  }
  func.func @transform_17(%arg0: i32, %arg1: i32) -> (i32, i32, i32) {
    %c0_i32 = arith.constant 0 : i32
    %c0_i32_0 = arith.constant 0 : i32
    return %arg1, %arg0, %c0_i32 : i32, i32, i32
  }
}

</mosaic_0001>

<llo_original>
// kernel: tpu_custom_call.1
$region0: #{tpu_custom_call.1}
  #allocation0 [shape = 'u32[]', space=smem, size = 0x4, offset = 0x4, fixed_abs, tag = 'smem constant byte address 0x4 - core index']
  #allocation1 [shape = 'u32[144,128]{1,0:T(1,128)}', space=vmem, size = 0x12000, scoped, tag = 'internal scratch']
  %s0 = inlined_call_operand.vmem [shape: bf16[2,56,24], index: 0, kind: input, shape index: {}]
  %s1 = inlined_call_operand.vmem [shape: f32[2,56,8], index: 1, kind: input, shape index: {}]
  %s2 = inlined_call_operand.vmem [shape: bf16[2,24,32], index: 2, kind: input, shape index: {}]
  %s3 = inlined_call_operand.vmem [shape: f32[2,1,32], index: 3, kind: input, shape index: {}]
  %s4 = inlined_call_operand.vmem [shape: bf16[2,32,32], index: 4, kind: input, shape index: {}]
  %s5 = inlined_call_operand.vmem [shape: f32[2,1,32], index: 5, kind: input, shape index: {}]
  %s6 = inlined_call_operand.vmem [shape: bf16[2,32,16], index: 6, kind: input, shape index: {}]
  %s7 = inlined_call_operand.vmem [shape: f32[2,1,16], index: 7, kind: input, shape index: {}]
  %s8 = inlined_call_operand.vmem [shape: bf16[2,16,16], index: 8, kind: input, shape index: {}]
  %s9 = inlined_call_operand.vmem [shape: f32[2,1,16], index: 9, kind: input, shape index: {}]
  %s10 = inlined_call_operand.vmem [shape: bf16[8,2], index: 10, kind: input, shape index: {}]
  %s11 = inlined_call_operand.vmem [shape: f32[1,2], index: 11, kind: input, shape index: {}]
  %s12 = inlined_call_operand.vmem [shape: bf16[2,4], index: 12, kind: input, shape index: {}]
  %s13 = inlined_call_operand.vmem [shape: f32[1,4], index: 13, kind: input, shape index: {}]
  %s14 = inlined_call_operand.vmem [shape: f32[2,56,8], index: 14, kind: output, shape index: {0}]
  %s15 = inlined_call_operand.vmem [shape: f32[2,56,8], index: 15, kind: output, shape index: {1}]
  %s16 = inlined_call_operand.vmem [shape: f32[2,56,8], index: 16, kind: output, shape index: {2}]
  %s17 = inlined_call_operand.vmem [shape: f32[2,56,4], index: 17, kind: output, shape index: {3}]
  %18 = xla_tuple %s14, %s15, %s16, %s17
  %s19 = sld [smem:[#allocation0]]
  $region113: #{tpu_custom_call.1} parent=0
    _
  %s21 = ssub.s32 1, %s19
  %s22 = scalar_select 0, %s21, %s19
  loop: start=0, step=1, limit=4
  $region2: #{tpu_custom_call.1} parent=0 // loop_pre_header
    _
  $region3: #{tpu_custom_call.1} parent=0 // loop_header
    %s24 = sphi 0, %s28
    %p25 = scmp.ge.s32.totalorder %s24, 4
    %s31 = sphi 0, %s43
    %s32 = sphi 0, %s39
    %s33 = sphi 0, %s31
    %s34 = sphi 0, %s32
    %s35 = sphi 0, %s33
    %s36 = sphi 0, %s34
    %s48 = sphi 0, %s50
    %s51 = sphi 0, %s48
    %s52 = sphi 0, %s51
    %s68 = sphi 0, %s52
    %s76 = sphi 0, %s78
    %s79 = sphi 0, %s76
    %s80 = sphi 0, %s79
    %s96 = sphi 0, %s80
    %s102 = sphi 0, %s104
    %s105 = sphi 0, %s102
    %s106 = sphi 0, %s105
    %s122 = sphi 0, %s106
    %s128 = sphi 0, %s130
    %s131 = sphi 0, %s128
    %s132 = sphi 0, %s131
    %s148 = sphi 0, %s132
    %s154 = sphi 0, %s156
    %s157 = sphi 0, %s154
    %s158 = sphi 0, %s157
    %s174 = sphi 0, %s158
    %s180 = sphi 0, %s182
    %s183 = sphi 0, %s180
    %s184 = sphi 0, %s183
    %s200 = sphi 0, %s184
    %s206 = sphi 0, %s208
    %s209 = sphi 0, %s206
    %s210 = sphi 0, %s209
    %s226 = sphi 0, %s210
    %s232 = sphi 0, %s234
    %s235 = sphi 0, %s232
    %s236 = sphi 0, %s235
    %s252 = sphi 0, %s236
    %s258 = sphi 0, %s260
    %s261 = sphi 0, %s258
    %s262 = sphi 0, %s261
    %s278 = sphi 0, %s262
    %s284 = sphi 0, %s286
    %s287 = sphi 0, %s284
    %s288 = sphi 0, %s287
    %s304 = sphi 0, %s288
    %s308 = sphi 0, %s308
    %s310 = sphi 0, %s308
    %s311 = sphi 0, %s310
    %s325 = sphi 0, %s311
    %s329 = sphi 0, %s329
    %s331 = sphi 0, %s329
    %s332 = sphi 0, %s331
    %s346 = sphi 0, %s332
    %s350 = sphi 0, %s350
    %s352 = sphi 0, %s350
    %s353 = sphi 0, %s352
    %s367 = sphi 0, %s353
    %s371 = sphi 0, %s371
    %s373 = sphi 0, %s371
    %s374 = sphi 0, %s373
    %s388 = sphi 0, %s374
    %s396 = sphi 0, %s398
    %s399 = sphi 0, %s396
    %s400 = sphi 0, %s399
    %s416 = sphi 0, %s400
    %s424 = sphi 0, %s426
    %s427 = sphi 0, %s424
    %s428 = sphi 0, %s427
    %s444 = sphi 0, %s428
    %s452 = sphi 0, %s454
    %s455 = sphi 0, %s452
    %s456 = sphi 0, %s455
    %s472 = sphi 0, %s456
    %s480 = sphi 0, %s482
    %s483 = sphi 0, %s480
    %s484 = sphi 0, %s483
    %s500 = sphi 0, %s484
  $region4: #{tpu_custom_call.1} parent=0 // loop_header_branch
    %27 = sbr.rel (%p25) target = $region8
  $region5: #{tpu_custom_call.1} parent=0 // loop_body
    %s29 = ssub.s32 %s24, 1
    %s30 = ssub.s32 %s24, 2
    %s37 = sadd.s32 1, %s32
    %p38 = scmp.ge.s32.totalorder %s37, 2
    %s39 = scalar_select %p38, 0, %s37
    %s40 = sadd.s32 1, %s31
    %s41 = scalar_select %p38, %s40, %s31
    %p42 = scmp.ge.s32.totalorder %s41, 1
    %s43 = scalar_select %p42, 0, %s41
    %s44 = ssub.s32 %s32, %s39
    %s45 = ssub.s32 %s31, %s43
    %s46 = sor.u32 %s44, %s45
    %p47 = scmp.eq.s32.totalorder %s46, 0
    %s49 = sadd.s32 %s48, 1
    %s50 = scalar_select %p47, %s48, %s49
    %p53 = pneg %p47
    %p54 = scmp.eq.s32.totalorder %s24, 1
    %p55 = por %p53, %p54
    %p56 = scmp.ne.s32.totalorder %s48, %s51
    %p57 = scmp.eq.s32.totalorder %s24, 0
    %p58 = por %p56, %p57
    %p59 = scmp.ne.s32.totalorder %s48, %s51
    %p60 = scmp.eq.s32.totalorder %s29, 1
    %p61 = por %p59, %p60
    %p62 = scmp.ne.s32.totalorder %s51, %s52
    %p63 = scmp.eq.s32.totalorder %s29, 0
    %p64 = por %p62, %p63
    %p65 = scmp.ne.s32.totalorder %s51, %s52
    %p66 = scmp.eq.s32.totalorder %s30, 1
    %p67 = por %p65, %p66
    %p69 = scmp.ne.s32.totalorder %s52, %s68
    %p70 = scmp.eq.s32.totalorder %s30, 0
    %p71 = por %p69, %p70
    %s72 = ssub.s32 %s32, %s39
    %s73 = ssub.s32 %s31, %s43
    %s74 = sor.u32 %s72, %s73
    %p75 = scmp.eq.s32.totalorder %s74, 0
    %s77 = sadd.s32 %s76, 1
    %s78 = scalar_select %p75, %s76, %s77
    %p81 = pneg %p75
    %p82 = scmp.eq.s32.totalorder %s24, 1
    %p83 = por %p81, %p82
    %p84 = scmp.ne.s32.totalorder %s76, %s79
    %p85 = scmp.eq.s32.totalorder %s24, 0
    %p86 = por %p84, %p85
    %p87 = scmp.ne.s32.totalorder %s76, %s79
    %p88 = scmp.eq.s32.totalorder %s29, 1
    %p89 = por %p87, %p88
    %p90 = scmp.ne.s32.totalorder %s79, %s80
    %p91 = scmp.eq.s32.totalorder %s29, 0
    %p92 = por %p90, %p91
    %p93 = scmp.ne.s32.totalorder %s79, %s80
    %p94 = scmp.eq.s32.totalorder %s30, 1
    %p95 = por %p93, %p94
    %p97 = scmp.ne.s32.totalorder %s80, %s96
    %p98 = scmp.eq.s32.totalorder %s30, 0
    %p99 = por %p97, %p98
    %s100 = ssub.s32 %s32, %s39
    %p101 = scmp.eq.s32.totalorder %s100, 0
    %s103 = sadd.s32 %s102, 1
    %s104 = scalar_select %p101, %s102, %s103
    %p107 = pneg %p101
    %p108 = scmp.eq.s32.totalorder %s24, 1
    %p109 = por %p107, %p108
    %p110 = scmp.ne.s32.totalorder %s102, %s105
    %p111 = scmp.eq.s32.totalorder %s24, 0
    %p112 = por %p110, %p111
    %p113 = scmp.ne.s32.totalorder %s102, %s105
    %p114 = scmp.eq.s32.totalorder %s29, 1
    %p115 = por %p113, %p114
    %p116 = scmp.ne.s32.totalorder %s105, %s106
    %p117 = scmp.eq.s32.totalorder %s29, 0
    %p118 = por %p116, %p117
    %p119 = scmp.ne.s32.totalorder %s105, %s106
    %p120 = scmp.eq.s32.totalorder %s30, 1
    %p121 = por %p119, %p120
    %p123 = scmp.ne.s32.totalorder %s106, %s122
    %p124 = scmp.eq.s32.totalorder %s30, 0
    %p125 = por %p123, %p124
    %s126 = ssub.s32 %s32, %s39
    %p127 = scmp.eq.s32.totalorder %s126, 0
    %s129 = sadd.s32 %s128, 1
    %s130 = scalar_select %p127, %s128, %s129
    %p133 = pneg %p127
    %p134 = scmp.eq.s32.totalorder %s24, 1
    %p135 = por %p133, %p134
    %p136 = scmp.ne.s32.totalorder %s128, %s131
    %p137 = scmp.eq.s32.totalorder %s24, 0
    %p138 = por %p136, %p137
    %p139 = scmp.ne.s32.totalorder %s128, %s131
    %p140 = scmp.eq.s32.totalorder %s29, 1
    %p141 = por %p139, %p140
    %p142 = scmp.ne.s32.totalorder %s131, %s132
    %p143 = scmp.eq.s32.totalorder %s29, 0
    %p144 = por %p142, %p143
    %p145 = scmp.ne.s32.totalorder %s131, %s132
    %p146 = scmp.eq.s32.totalorder %s30, 1
    %p147 = por %p145, %p146
    %p149 = scmp.ne.s32.totalorder %s132, %s148
    %p150 = scmp.eq.s32.totalorder %s30, 0
    %p151 = por %p149, %p150
    %s152 = ssub.s32 %s32, %s39
    %p153 = scmp.eq.s32.totalorder %s152, 0
    %s155 = sadd.s32 %s154, 1
    %s156 = scalar_select %p153, %s154, %s155
    %p159 = pneg %p153
    %p160 = scmp.eq.s32.totalorder %s24, 1
    %p161 = por %p159, %p160
    %p162 = scmp.ne.s32.totalorder %s154, %s157
    %p163 = scmp.eq.s32.totalorder %s24, 0
    %p164 = por %p162, %p163
    %p165 = scmp.ne.s32.totalorder %s154, %s157
    %p166 = scmp.eq.s32.totalorder %s29, 1
    %p167 = por %p165, %p166
    %p168 = scmp.ne.s32.totalorder %s157, %s158
    %p169 = scmp.eq.s32.totalorder %s29, 0
    %p170 = por %p168, %p169
    %p171 = scmp.ne.s32.totalorder %s157, %s158
    %p172 = scmp.eq.s32.totalorder %s30, 1
    %p173 = por %p171, %p172
    %p175 = scmp.ne.s32.totalorder %s158, %s174
    %p176 = scmp.eq.s32.totalorder %s30, 0
    %p177 = por %p175, %p176
    %s178 = ssub.s32 %s32, %s39
    %p179 = scmp.eq.s32.totalorder %s178, 0
    %s181 = sadd.s32 %s180, 1
    %s182 = scalar_select %p179, %s180, %s181
    %p185 = pneg %p179
    %p186 = scmp.eq.s32.totalorder %s24, 1
    %p187 = por %p185, %p186
    %p188 = scmp.ne.s32.totalorder %s180, %s183
    %p189 = scmp.eq.s32.totalorder %s24, 0
    %p190 = por %p188, %p189
    %p191 = scmp.ne.s32.totalorder %s180, %s183
    %p192 = scmp.eq.s32.totalorder %s29, 1
    %p193 = por %p191, %p192
    %p194 = scmp.ne.s32.totalorder %s183, %s184
    %p195 = scmp.eq.s32.totalorder %s29, 0
    %p196 = por %p194, %p195
    %p197 = scmp.ne.s32.totalorder %s183, %s184
    %p198 = scmp.eq.s32.totalorder %s30, 1
    %p199 = por %p197, %p198
    %p201 = scmp.ne.s32.totalorder %s184, %s200
    %p202 = scmp.eq.s32.totalorder %s30, 0
    %p203 = por %p201, %p202
    %s204 = ssub.s32 %s32, %s39
    %p205 = scmp.eq.s32.totalorder %s204, 0
    %s207 = sadd.s32 %s206, 1
    %s208 = scalar_select %p205, %s206, %s207
    %p211 = pneg %p205
    %p212 = scmp.eq.s32.totalorder %s24, 1
    %p213 = por %p211, %p212
    %p214 = scmp.ne.s32.totalorder %s206, %s209
    %p215 = scmp.eq.s32.totalorder %s24, 0
    %p216 = por %p214, %p215
    %p217 = scmp.ne.s32.totalorder %s206, %s209
    %p218 = scmp.eq.s32.totalorder %s29, 1
    %p219 = por %p217, %p218
    %p220 = scmp.ne.s32.totalorder %s209, %s210
    %p221 = scmp.eq.s32.totalorder %s29, 0
    %p222 = por %p220, %p221
    %p223 = scmp.ne.s32.totalorder %s209, %s210
    %p224 = scmp.eq.s32.totalorder %s30, 1
    %p225 = por %p223, %p224
    %p227 = scmp.ne.s32.totalorder %s210, %s226
    %p228 = scmp.eq.s32.totalorder %s30, 0
    %p229 = por %p227, %p228
    %s230 = ssub.s32 %s32, %s39
    %p231 = scmp.eq.s32.totalorder %s230, 0
    %s233 = sadd.s32 %s232, 1
    %s234 = scalar_select %p231, %s232, %s233
    %p237 = pneg %p231
    %p238 = scmp.eq.s32.totalorder %s24, 1
    %p239 = por %p237, %p238
    %p240 = scmp.ne.s32.totalorder %s232, %s235
    %p241 = scmp.eq.s32.totalorder %s24, 0
    %p242 = por %p240, %p241
    %p243 = scmp.ne.s32.totalorder %s232, %s235
    %p244 = scmp.eq.s32.totalorder %s29, 1
    %p245 = por %p243, %p244
    %p246 = scmp.ne.s32.totalorder %s235, %s236
    %p247 = scmp.eq.s32.totalorder %s29, 0
    %p248 = por %p246, %p247
    %p249 = scmp.ne.s32.totalorder %s235, %s236
    %p250 = scmp.eq.s32.totalorder %s30, 1
    %p251 = por %p249, %p250
    %p253 = scmp.ne.s32.totalorder %s236, %s252
    %p254 = scmp.eq.s32.totalorder %s30, 0
    %p255 = por %p253, %p254
    %s256 = ssub.s32 %s32, %s39
    %p257 = scmp.eq.s32.totalorder %s256, 0
    %s259 = sadd.s32 %s258, 1
    %s260 = scalar_select %p257, %s258, %s259
    %p263 = pneg %p257
    %p264 = scmp.eq.s32.totalorder %s24, 1
    %p265 = por %p263, %p264
    %p266 = scmp.ne.s32.totalorder %s258, %s261
    %p267 = scmp.eq.s32.totalorder %s24, 0
    %p268 = por %p266, %p267
    %p269 = scmp.ne.s32.totalorder %s258, %s261
    %p270 = scmp.eq.s32.totalorder %s29, 1
    %p271 = por %p269, %p270
    %p272 = scmp.ne.s32.totalorder %s261, %s262
    %p273 = scmp.eq.s32.totalorder %s29, 0
    %p274 = por %p272, %p273
    %p275 = scmp.ne.s32.totalorder %s261, %s262
    %p276 = scmp.eq.s32.totalorder %s30, 1
    %p277 = por %p275, %p276
    %p279 = scmp.ne.s32.totalorder %s262, %s278
    %p280 = scmp.eq.s32.totalorder %s30, 0
    %p281 = por %p279, %p280
    %s282 = ssub.s32 %s32, %s39
    %p283 = scmp.eq.s32.totalorder %s282, 0
    %s285 = sadd.s32 %s284, 1
    %s286 = scalar_select %p283, %s284, %s285
    %p289 = pneg %p283
    %p290 = scmp.eq.s32.totalorder %s24, 1
    %p291 = por %p289, %p290
    %p292 = scmp.ne.s32.totalorder %s284, %s287
    %p293 = scmp.eq.s32.totalorder %s24, 0
    %p294 = por %p292, %p293
    %p295 = scmp.ne.s32.totalorder %s284, %s287
    %p296 = scmp.eq.s32.totalorder %s29, 1
    %p297 = por %p295, %p296
    %p298 = scmp.ne.s32.totalorder %s287, %s288
    %p299 = scmp.eq.s32.totalorder %s29, 0
    %p300 = por %p298, %p299
    %p301 = scmp.ne.s32.totalorder %s287, %s288
    %p302 = scmp.eq.s32.totalorder %s30, 1
    %p303 = por %p301, %p302
    %p305 = scmp.ne.s32.totalorder %s288, %s304
    %p306 = scmp.eq.s32.totalorder %s30, 0
    %p307 = por %p305, %p306
    %s309 = sadd.s32 %s308, 1
    %p312 = scmp.eq.s32.totalorder %s24, 1
    %p313 = scmp.ne.s32.totalorder %s308, %s310
    %p314 = scmp.eq.s32.totalorder %s24, 0
    %p315 = por %p313, %p314
    %p316 = scmp.ne.s32.totalorder %s308, %s310
    %p317 = scmp.eq.s32.totalorder %s29, 1
    %p318 = por %p316, %p317
    %p319 = scmp.ne.s32.totalorder %s310, %s311
    %p320 = scmp.eq.s32.totalorder %s29, 0
    %p321 = por %p319, %p320
    %p322 = scmp.ne.s32.totalorder %s310, %s311
    %p323 = scmp.eq.s32.totalorder %s30, 1
    %p324 = por %p322, %p323
    %p326 = scmp.ne.s32.totalorder %s311, %s325
    %p327 = scmp.eq.s32.totalorder %s30, 0
    %p328 = por %p326, %p327
    %s330 = sadd.s32 %s329, 1
    %p333 = scmp.eq.s32.totalorder %s24, 1
    %p334 = scmp.ne.s32.totalorder %s329, %s331
    %p335 = scmp.eq.s32.totalorder %s24, 0
    %p336 = por %p334, %p335
    %p337 = scmp.ne.s32.totalorder %s329, %s331
    %p338 = scmp.eq.s32.totalorder %s29, 1
    %p339 = por %p337, %p338
    %p340 = scmp.ne.s32.totalorder %s331, %s332
    %p341 = scmp.eq.s32.totalorder %s29, 0
    %p342 = por %p340, %p341
    %p343 = scmp.ne.s32.totalorder %s331, %s332
    %p344 = scmp.eq.s32.totalorder %s30, 1
    %p345 = por %p343, %p344
    %p347 = scmp.ne.s32.totalorder %s332, %s346
    %p348 = scmp.eq.s32.totalorder %s30, 0
    %p349 = por %p347, %p348
    %s351 = sadd.s32 %s350, 1
    %p354 = scmp.eq.s32.totalorder %s24, 1
    %p355 = scmp.ne.s32.totalorder %s350, %s352
    %p356 = scmp.eq.s32.totalorder %s24, 0
    %p357 = por %p355, %p356
    %p358 = scmp.ne.s32.totalorder %s350, %s352
    %p359 = scmp.eq.s32.totalorder %s29, 1
    %p360 = por %p358, %p359
    %p361 = scmp.ne.s32.totalorder %s352, %s353
    %p362 = scmp.eq.s32.totalorder %s29, 0
    %p363 = por %p361, %p362
    %p364 = scmp.ne.s32.totalorder %s352, %s353
    %p365 = scmp.eq.s32.totalorder %s30, 1
    %p366 = por %p364, %p365
    %p368 = scmp.ne.s32.totalorder %s353, %s367
    %p369 = scmp.eq.s32.totalorder %s30, 0
    %p370 = por %p368, %p369
    %s372 = sadd.s32 %s371, 1
    %p375 = scmp.eq.s32.totalorder %s24, 1
    %p376 = scmp.ne.s32.totalorder %s371, %s373
    %p377 = scmp.eq.s32.totalorder %s24, 0
    %p378 = por %p376, %p377
    %p379 = scmp.ne.s32.totalorder %s371, %s373
    %p380 = scmp.eq.s32.totalorder %s29, 1
    %p381 = por %p379, %p380
    %p382 = scmp.ne.s32.totalorder %s373, %s374
    %p383 = scmp.eq.s32.totalorder %s29, 0
    %p384 = por %p382, %p383
    %p385 = scmp.ne.s32.totalorder %s373, %s374
    %p386 = scmp.eq.s32.totalorder %s30, 1
    %p387 = por %p385, %p386
    %p389 = scmp.ne.s32.totalorder %s374, %s388
    %p390 = scmp.eq.s32.totalorder %s30, 0
    %p391 = por %p389, %p390
    %s392 = ssub.s32 %s32, %s39
    %s393 = ssub.s32 %s31, %s43
    %s394 = sor.u32 %s392, %s393
    %p395 = scmp.eq.s32.totalorder %s394, 0
    %s397 = sadd.s32 %s396, 1
    %s398 = scalar_select %p395, %s396, %s397
    %p401 = pneg %p395
    %p402 = scmp.eq.s32.totalorder %s24, 1
    %p403 = por %p401, %p402
    %p404 = scmp.ne.s32.totalorder %s396, %s399
    %p405 = scmp.eq.s32.totalorder %s24, 0
    %p406 = por %p404, %p405
    %p407 = scmp.ne.s32.totalorder %s396, %s399
    %p408 = scmp.eq.s32.totalorder %s29, 1
    %p409 = por %p407, %p408
    %p410 = scmp.ne.s32.totalorder %s399, %s400
    %p411 = scmp.eq.s32.totalorder %s29, 0
    %p412 = por %p410, %p411
    %p413 = scmp.ne.s32.totalorder %s399, %s400
    %p414 = scmp.eq.s32.totalorder %s30, 1
    %p415 = por %p413, %p414
    %p417 = scmp.ne.s32.totalorder %s400, %s416
    %p418 = scmp.eq.s32.totalorder %s30, 0
    %p419 = por %p417, %p418
    %s420 = ssub.s32 %s32, %s39
    %s421 = ssub.s32 %s31, %s43
    %s422 = sor.u32 %s420, %s421
    %p423 = scmp.eq.s32.totalorder %s422, 0
    %s425 = sadd.s32 %s424, 1
    %s426 = scalar_select %p423, %s424, %s425
    %p429 = pneg %p423
    %p430 = scmp.eq.s32.totalorder %s24, 1
    %p431 = por %p429, %p430
    %p432 = scmp.ne.s32.totalorder %s424, %s427
    %p433 = scmp.eq.s32.totalorder %s24, 0
    %p434 = por %p432, %p433
    %p435 = scmp.ne.s32.totalorder %s424, %s427
    %p436 = scmp.eq.s32.totalorder %s29, 1
    %p437 = por %p435, %p436
    %p438 = scmp.ne.s32.totalorder %s427, %s428
    %p439 = scmp.eq.s32.totalorder %s29, 0
    %p440 = por %p438, %p439
    %p441 = scmp.ne.s32.totalorder %s427, %s428
    %p442 = scmp.eq.s32.totalorder %s30, 1
    %p443 = por %p441, %p442
    %p445 = scmp.ne.s32.totalorder %s428, %s444
    %p446 = scmp.eq.s32.totalorder %s30, 0
    %p447 = por %p445, %p446
    %s448 = ssub.s32 %s32, %s39
    %s449 = ssub.s32 %s31, %s43
    %s450 = sor.u32 %s448, %s449
    %p451 = scmp.eq.s32.totalorder %s450, 0
    %s453 = sadd.s32 %s452, 1
    %s454 = scalar_select %p451, %s452, %s453
    %p457 = pneg %p451
    %p458 = scmp.eq.s32.totalorder %s24, 1
    %p459 = por %p457, %p458
    %p460 = scmp.ne.s32.totalorder %s452, %s455
    %p461 = scmp.eq.s32.totalorder %s24, 0
    %p462 = por %p460, %p461
    %p463 = scmp.ne.s32.totalorder %s452, %s455
    %p464 = scmp.eq.s32.totalorder %s29, 1
    %p465 = por %p463, %p464
    %p466 = scmp.ne.s32.totalorder %s455, %s456
    %p467 = scmp.eq.s32.totalorder %s29, 0
    %p468 = por %p466, %p467
    %p469 = scmp.ne.s32.totalorder %s455, %s456
    %p470 = scmp.eq.s32.totalorder %s30, 1
    %p471 = por %p469, %p470
    %p473 = scmp.ne.s32.totalorder %s456, %s472
    %p474 = scmp.eq.s32.totalorder %s30, 0
    %p475 = por %p473, %p474
    %s476 = ssub.s32 %s32, %s39
    %s477 = ssub.s32 %s31, %s43
    %s478 = sor.u32 %s476, %s477
    %p479 = scmp.eq.s32.totalorder %s478, 0
    %s481 = sadd.s32 %s480, 1
    %s482 = scalar_select %p479, %s480, %s481
    %p485 = pneg %p479
    %p486 = scmp.eq.s32.totalorder %s24, 1
    %p487 = por %p485, %p486
    %p488 = scmp.ne.s32.totalorder %s480, %s483
    %p489 = scmp.eq.s32.totalorder %s24, 0
    %p490 = por %p488, %p489
    %p491 = scmp.ne.s32.totalorder %s480, %s483
    %p492 = scmp.eq.s32.totalorder %s29, 1
    %p493 = por %p491, %p492
    %p494 = scmp.ne.s32.totalorder %s483, %s484
    %p495 = scmp.eq.s32.totalorder %s29, 0
    %p496 = por %p494, %p495
    %p497 = scmp.ne.s32.totalorder %s483, %s484
    %p498 = scmp.eq.s32.totalorder %s30, 1
    %p499 = por %p497, %p498
    %p501 = scmp.ne.s32.totalorder %s484, %s500
    %p502 = scmp.eq.s32.totalorder %s30, 0
    %p503 = por %p501, %p502
    %p504 = scmp.le.s32.totalorder 1, %s24
    %p505 = scmp.lt.s32.totalorder %s24, 3
    %p506 = pnand %p504, %p505
    %p507 = pneg %p506
    // Predicated region
    $region9: #{tpu_custom_call.1} parent=5 // pred_check
      _
    $region10: #{tpu_custom_call.1} parent=5 // pred_check_branch
      %509 = sbr.rel (%p506) target = $region12
    $region11: #{tpu_custom_call.1} parent=5 // pred_region
      %s510 = ssub.s32 %s24, 1
      // Predicated region
      $region13: #{tpu_custom_call.1} parent=11 // pred_check
        %p511 = pneg %p321
      $region14: #{tpu_custom_call.1} parent=11 // pred_check_branch
        %513 = sbr.rel (%p511) target = $region16
      $region15: #{tpu_custom_call.1} parent=11 // pred_region
        _
      $region16: #{tpu_custom_call.1} parent=11 // pred_fallthru
        _
      // Predicated region
      $region17: #{tpu_custom_call.1} parent=11 // pred_check
        %p514 = pneg %p342
      $region18: #{tpu_custom_call.1} parent=11 // pred_check_branch
        %516 = sbr.rel (%p514) target = $region20
      $region19: #{tpu_custom_call.1} parent=11 // pred_region
        _
      $region20: #{tpu_custom_call.1} parent=11 // pred_fallthru
        _
      // Predicated region
      $region21: #{tpu_custom_call.1} parent=11 // pred_check
        %p517 = pneg %p363
      $region22: #{tpu_custom_call.1} parent=11 // pred_check_branch
        %519 = sbr.rel (%p517) target = $region24
      $region23: #{tpu_custom_call.1} parent=11 // pred_region
        _
      $region24: #{tpu_custom_call.1} parent=11 // pred_fallthru
        _
      // Predicated region
      $region25: #{tpu_custom_call.1} parent=11 // pred_check
        %p520 = pneg %p384
      $region26: #{tpu_custom_call.1} parent=11 // pred_check_branch
        %522 = sbr.rel (%p520) target = $region28
      $region27: #{tpu_custom_call.1} parent=11 // pred_region
        _
      $region28: #{tpu_custom_call.1} parent=11 // pred_fallthru
        _
    $region12: #{tpu_custom_call.1} parent=5 // pred_fallthru
      _
    %p523 = scmp.lt.s32.totalorder %s24, 2
    // Predicated region
    $region29: #{tpu_custom_call.1} parent=5 // pred_check
      %p524 = pneg %p523
    $region30: #{tpu_custom_call.1} parent=5 // pred_check_branch
      %526 = sbr.rel (%p524) target = $region32
    $region31: #{tpu_custom_call.1} parent=5 // pred_region
      // Predicated region
      $region33: #{tpu_custom_call.1} parent=31 // pred_check
        %p527 = pneg %p58
      $region34: #{tpu_custom_call.1} parent=31 // pred_check_branch
        %529 = sbr.rel (%p527) target = $region36
      $region35: #{tpu_custom_call.1} parent=31 // pred_region
        %s530 = smul.u32 7, %s31
        %p531 = scmp.lt.s32.totalorder %s32, 1
        %s532 = scalar_select %p531, %s32, 1
        %p533 = scmp.lt.s32.totalorder %s530, 6
        %s534 = scalar_select %p533, %s530, 6
        %s535 = smul.addr %s532, 7
        %s536 = sadd.s32 %s534, %s535
        %s537 = smul.addr %s536, 4
        %s538 = scalar_lea.vmem %s0, %s537
        %s539 = smul.u32 7, %s31
      $region36: #{tpu_custom_call.1} parent=31 // pred_fallthru
        _
      // Predicated region
      $region37: #{tpu_custom_call.1} parent=31 // pred_check
        %p540 = pneg %p86
      $region38: #{tpu_custom_call.1} parent=31 // pred_check_branch
        %542 = sbr.rel (%p540) target = $region40
      $region39: #{tpu_custom_call.1} parent=31 // pred_region
        %s543 = smul.u32 7, %s31
        %p544 = scmp.lt.s32.totalorder %s32, 1
        %s545 = scalar_select %p544, %s32, 1
        %p546 = scmp.lt.s32.totalorder %s543, 6
        %s547 = scalar_select %p546, %s543, 6
        %s548 = smul.addr %s545, 7
        %s549 = sadd.s32 %s547, %s548
        %s550 = smul.addr %s549, 8
        %s551 = scalar_lea.vmem %s1, %s550
        %s552 = smul.u32 7, %s31
      $region40: #{tpu_custom_call.1} parent=31 // pred_fallthru
        _
      // Predicated region
      $region41: #{tpu_custom_call.1} parent=31 // pred_check
        %p553 = pneg %p112
      $region42: #{tpu_custom_call.1} parent=31 // pred_check_branch
        %555 = sbr.rel (%p553) target = $region44
      $region43: #{tpu_custom_call.1} parent=31 // pred_region
        %p556 = scmp.lt.s32.totalorder %s32, 1
        %s557 = scalar_select %p556, %s32, 1
        %s558 = smul.addr %s557, 3
        %s559 = smul.addr %s558, 4
        %s560 = scalar_lea.vmem %s2, %s559
      $region44: #{tpu_custom_call.1} parent=31 // pred_fallthru
        _
      // Predicated region
      $region45: #{tpu_custom_call.1} parent=31 // pred_check
        %p561 = pneg %p138
      $region46: #{tpu_custom_call.1} parent=31 // pred_check_branch
        %563 = sbr.rel (%p561) target = $region48
      $region47: #{tpu_custom_call.1} parent=31 // pred_region
        %p564 = scmp.lt.s32.totalorder %s32, 1
        %s565 = scalar_select %p564, %s32, 1
        %s566 = scalar_lea.vmem %s3, %s565
      $region48: #{tpu_custom_call.1} parent=31 // pred_fallthru
        _
      // Predicated region
      $region49: #{tpu_custom_call.1} parent=31 // pred_check
        %p567 = pneg %p164
      $region50: #{tpu_custom_call.1} parent=31 // pred_check_branch
        %569 = sbr.rel (%p567) target = $region52
      $region51: #{tpu_custom_call.1} parent=31 // pred_region
        %p570 = scmp.lt.s32.totalorder %s32, 1
        %s571 = scalar_select %p570, %s32, 1
        %s572 = smul.addr %s571, 4
        %s573 = smul.addr %s572, 4
        %s574 = scalar_lea.vmem %s4, %s573
      $region52: #{tpu_custom_call.1} parent=31 // pred_fallthru
        _
      // Predicated region
      $region53: #{tpu_custom_call.1} parent=31 // pred_check
        %p575 = pneg %p190
      $region54: #{tpu_custom_call.1} parent=31 // pred_check_branch
        %577 = sbr.rel (%p575) target = $region56
      $region55: #{tpu_custom_call.1} parent=31 // pred_region
        %p578 = scmp.lt.s32.totalorder %s32, 1
        %s579 = scalar_select %p578, %s32, 1
        %s580 = scalar_lea.vmem %s5, %s579
      $region56: #{tpu_custom_call.1} parent=31 // pred_fallthru
        _
      // Predicated region
      $region57: #{tpu_custom_call.1} parent=31 // pred_check
        %p581 = pneg %p216
      $region58: #{tpu_custom_call.1} parent=31 // pred_check_branch
        %583 = sbr.rel (%p581) target = $region60
      $region59: #{tpu_custom_call.1} parent=31 // pred_region
        %p584 = scmp.lt.s32.totalorder %s32, 1
        %s585 = scalar_select %p584, %s32, 1
        %s586 = smul.addr %s585, 4
        %s587 = smul.addr %s586, 4
        %s588 = scalar_lea.vmem %s6, %s587
      $region60: #{tpu_custom_call.1} parent=31 // pred_fallthru
        _
      // Predicated region
      $region61: #{tpu_custom_call.1} parent=31 // pred_check
        %p589 = pneg %p242
      $region62: #{tpu_custom_call.1} parent=31 // pred_check_branch
        %591 = sbr.rel (%p589) target = $region64
      $region63: #{tpu_custom_call.1} parent=31 // pred_region
        %p592 = scmp.lt.s32.totalorder %s32, 1
        %s593 = scalar_select %p592, %s32, 1
        %s594 = scalar_lea.vmem %s7, %s593
      $region64: #{tpu_custom_call.1} parent=31 // pred_fallthru
        _
      // Predicated region
      $region65: #{tpu_custom_call.1} parent=31 // pred_check
        %p595 = pneg %p268
      $region66: #{tpu_custom_call.1} parent=31 // pred_check_branch
        %597 = sbr.rel (%p595) target = $region68
      $region67: #{tpu_custom_call.1} parent=31 // pred_region
        %p598 = scmp.lt.s32.totalorder %s32, 1
        %s599 = scalar_select %p598, %s32, 1
        %s600 = smul.addr %s599, 2
        %s601 = smul.addr %s600, 4
        %s602 = scalar_lea.vmem %s8, %s601
      $region68: #{tpu_custom_call.1} parent=31 // pred_fallthru
        _
      // Predicated region
      $region69: #{tpu_custom_call.1} parent=31 // pred_check
        %p603 = pneg %p294
      $region70: #{tpu_custom_call.1} parent=31 // pred_check_branch
        %605 = sbr.rel (%p603) target = $region72
      $region71: #{tpu_custom_call.1} parent=31 // pred_region
        %p606 = scmp.lt.s32.totalorder %s32, 1
        %s607 = scalar_select %p606, %s32, 1
        %s608 = scalar_lea.vmem %s9, %s607
      $region72: #{tpu_custom_call.1} parent=31 // pred_fallthru
        _
    $region32: #{tpu_custom_call.1} parent=5 // pred_fallthru
      _
    %p609 = scmp.le.s32.totalorder 1, %s24
    %p610 = scmp.lt.s32.totalorder %s24, 3
    %p611 = pnand %p609, %p610
    %p612 = pneg %p611
    // Predicated region
    $region73: #{tpu_custom_call.1} parent=5 // pred_check
      _
    $region74: #{tpu_custom_call.1} parent=5 // pred_check_branch
      %614 = sbr.rel (%p611) target = $region76
    $region75: #{tpu_custom_call.1} parent=5 // pred_region
      %s615 = ssub.s32 %s24, 1
      %s616 = smul.u32 7, %s33
      %p617 = scmp.lt.s32.totalorder %s34, 1
      %s618 = scalar_select %p617, %s34, 1
      %p619 = scmp.lt.s32.totalorder %s616, 6
      %s620 = scalar_select %p619, %s616, 6
      %s621 = smul.addr %s618, 7
      %s622 = sadd.s32 %s620, %s621
      %s623 = smul.addr %s622, 4
      %s624 = scalar_lea.vmem %s0, %s623
      %p625 = pneg %p64
      %p626 = pneg %p61
      %s627 = smul.u32 7, %s33
      %p628 = scmp.lt.s32.totalorder %s34, 1
      %s629 = scalar_select %p628, %s34, 1
      %p630 = scmp.lt.s32.totalorder %s627, 6
      %s631 = scalar_select %p630, %s627, 6
      %s632 = smul.addr %s629, 7
      %s633 = sadd.s32 %s631, %s632
      %s634 = smul.addr %s633, 8
      %s635 = scalar_lea.vmem %s1, %s634
      %p636 = pneg %p92
      %p637 = pneg %p89
      %p638 = scmp.lt.s32.totalorder %s34, 1
      %s639 = scalar_select %p638, %s34, 1
      %s640 = smul.addr %s639, 3
      %s641 = smul.addr %s640, 4
      %s642 = scalar_lea.vmem %s2, %s641
      %p643 = pneg %p118
      %p644 = pneg %p115
      %p645 = scmp.lt.s32.totalorder %s34, 1
      %s646 = scalar_select %p645, %s34, 1
      %s647 = scalar_lea.vmem %s3, %s646
      %p648 = pneg %p144
      %p649 = pneg %p141
      %p650 = scmp.lt.s32.totalorder %s34, 1
      %s651 = scalar_select %p650, %s34, 1
      %s652 = smul.addr %s651, 4
      %s653 = smul.addr %s652, 4
      %s654 = scalar_lea.vmem %s4, %s653
      %p655 = pneg %p170
      %p656 = pneg %p167
      %p657 = scmp.lt.s32.totalorder %s34, 1
      %s658 = scalar_select %p657, %s34, 1
      %s659 = scalar_lea.vmem %s5, %s658
      %p660 = pneg %p196
      %p661 = pneg %p193
      %p662 = scmp.lt.s32.totalorder %s34, 1
      %s663 = scalar_select %p662, %s34, 1
      %s664 = smul.addr %s663, 4
      %s665 = smul.addr %s664, 4
      %s666 = scalar_lea.vmem %s6, %s665
      %p667 = pneg %p222
      %p668 = pneg %p219
      %p669 = scmp.lt.s32.totalorder %s34, 1
      %s670 = scalar_select %p669, %s34, 1
      %s671 = scalar_lea.vmem %s7, %s670
      %p672 = pneg %p248
      %p673 = pneg %p245
      %p674 = scmp.lt.s32.totalorder %s34, 1
      %s675 = scalar_select %p674, %s34, 1
      %s676 = smul.addr %s675, 2
      %s677 = smul.addr %s676, 4
      %s678 = scalar_lea.vmem %s8, %s677
      %p679 = pneg %p274
      %p680 = pneg %p271
      %p681 = scmp.lt.s32.totalorder %s34, 1
      %s682 = scalar_select %p681, %s34, 1
      %s683 = scalar_lea.vmem %s9, %s682
      %p684 = pneg %p300
      %p685 = pneg %p297
      %p686 = pneg %p321
      %p687 = pneg %p318
      %p688 = pneg %p342
      %p689 = pneg %p339
      %p690 = pneg %p363
      %p691 = pneg %p360
      %p692 = pneg %p384
      %p693 = pneg %p381
      %p694 = pneg %p412
      %p695 = pneg %p409
      %s696 = smul.u32 7, %s33
      %p697 = scmp.lt.s32.totalorder %s34, 1
      %s698 = scalar_select %p697, %s34, 1
      %p699 = scmp.lt.s32.totalorder %s696, 6
      %s700 = scalar_select %p699, %s696, 6
      %s701 = smul.addr %s698, 7
      %s702 = sadd.s32 %s700, %s701
      %s703 = smul.addr %s702, 8
      %s704 = scalar_lea.vmem %s14, %s703
      %p705 = pneg %p440
      %p706 = pneg %p437
      %s707 = smul.u32 7, %s33
      %p708 = scmp.lt.s32.totalorder %s34, 1
      %s709 = scalar_select %p708, %s34, 1
      %p710 = scmp.lt.s32.totalorder %s707, 6
      %s711 = scalar_select %p710, %s707, 6
      %s712 = smul.addr %s709, 7
      %s713 = sadd.s32 %s711, %s712
      %s714 = smul.addr %s713, 8
      %s715 = scalar_lea.vmem %s15, %s714
      %p716 = pneg %p468
      %p717 = pneg %p465
      %s718 = smul.u32 7, %s33
      %p719 = scmp.lt.s32.totalorder %s34, 1
      %s720 = scalar_select %p719, %s34, 1
      %p721 = scmp.lt.s32.totalorder %s718, 6
      %s722 = scalar_select %p721, %s718, 6
      %s723 = smul.addr %s720, 7
      %s724 = sadd.s32 %s722, %s723
      %s725 = smul.addr %s724, 8
      %s726 = scalar_lea.vmem %s16, %s725
      %p727 = pneg %p496
      %p728 = pneg %p493
      %s729 = smul.u32 7, %s33
      %p730 = scmp.lt.s32.totalorder %s34, 1
      %s731 = scalar_select %p730, %s34, 1
      %p732 = scmp.lt.s32.totalorder %s729, 6
      %s733 = scalar_select %p732, %s729, 6
      %s734 = smul.addr %s731, 7
      %s735 = sadd.s32 %s733, %s734
      %s736 = smul.addr %s735, 8
      %s737 = scalar_lea.vmem %s17, %s736
      %s738 = smul.u32 7, %s33
      %p739 = scmp.lt.s32.totalorder %s34, 1
      %s740 = scalar_select %p739, %s34, 1
      %p741 = scmp.lt.s32.totalorder %s738, 6
      %s742 = scalar_select %p741, %s738, 6
      %s743 = smul.addr %s740, 7
      %s744 = sadd.s32 %s742, %s743
      %s745 = smul.addr %s744, 4
      %s746 = scalar_lea.vmem %s0, %s745
      %s747 = smul.u32 7, %s33
      %s748 = smul.u32 7, %s33
      %p749 = scmp.lt.s32.totalorder %s34, 1
      %s750 = scalar_select %p749, %s34, 1
      %p751 = scmp.lt.s32.totalorder %s748, 6
      %s752 = scalar_select %p751, %s748, 6
      %s753 = smul.addr %s750, 7
      %s754 = sadd.s32 %s752, %s753
      %s755 = smul.addr %s754, 8
      %s756 = scalar_lea.vmem %s1, %s755
      %s757 = smul.u32 7, %s33
      %p758 = scmp.lt.s32.totalorder %s34, 1
      %s759 = scalar_select %p758, %s34, 1
      %s760 = smul.addr %s759, 3
      %s761 = smul.addr %s760, 4
      %s762 = scalar_lea.vmem %s2, %s761
      %p763 = scmp.lt.s32.totalorder %s34, 1
      %s764 = scalar_select %p763, %s34, 1
      %s765 = scalar_lea.vmem %s3, %s764
      %p766 = scmp.lt.s32.totalorder %s34, 1
      %s767 = scalar_select %p766, %s34, 1
      %s768 = smul.addr %s767, 4
      %s769 = smul.addr %s768, 4
      %s770 = scalar_lea.vmem %s4, %s769
      %p771 = scmp.lt.s32.totalorder %s34, 1
      %s772 = scalar_select %p771, %s34, 1
      %s773 = scalar_lea.vmem %s5, %s772
      %p774 = scmp.lt.s32.totalorder %s34, 1
      %s775 = scalar_select %p774, %s34, 1
      %s776 = smul.addr %s775, 4
      %s777 = smul.addr %s776, 4
      %s778 = scalar_lea.vmem %s6, %s777
      %p779 = scmp.lt.s32.totalorder %s34, 1
      %s780 = scalar_select %p779, %s34, 1
      %s781 = scalar_lea.vmem %s7, %s780
      %p782 = scmp.lt.s32.totalorder %s34, 1
      %s783 = scalar_select %p782, %s34, 1
      %s784 = smul.addr %s783, 2
      %s785 = smul.addr %s784, 4
      %s786 = scalar_lea.vmem %s8, %s785
      %p787 = scmp.lt.s32.totalorder %s34, 1
      %s788 = scalar_select %p787, %s34, 1
      %s789 = scalar_lea.vmem %s9, %s788
      %s790 = smul.u32 7, %s33
      %p791 = scmp.lt.s32.totalorder %s34, 1
      %s792 = scalar_select %p791, %s34, 1
      %p793 = scmp.lt.s32.totalorder %s790, 6
      %s794 = scalar_select %p793, %s790, 6
      %s795 = smul.addr %s792, 7
      %s796 = sadd.s32 %s794, %s795
      %s797 = smul.addr %s796, 8
      %s798 = scalar_lea.vmem %s14, %s797
      %s799 = smul.u32 7, %s33
      %s800 = smul.u32 7, %s33
      %p801 = scmp.lt.s32.totalorder %s34, 1
      %s802 = scalar_select %p801, %s34, 1
      %p803 = scmp.lt.s32.totalorder %s800, 6
      %s804 = scalar_select %p803, %s800, 6
      %s805 = smul.addr %s802, 7
      %s806 = sadd.s32 %s804, %s805
      %s807 = smul.addr %s806, 8
      %s808 = scalar_lea.vmem %s15, %s807
      %s809 = smul.u32 7, %s33
      %s810 = smul.u32 7, %s33
      %p811 = scmp.lt.s32.totalorder %s34, 1
      %s812 = scalar_select %p811, %s34, 1
      %p813 = scmp.lt.s32.totalorder %s810, 6
      %s814 = scalar_select %p813, %s810, 6
      %s815 = smul.addr %s812, 7
      %s816 = sadd.s32 %s814, %s815
      %s817 = smul.addr %s816, 8
      %s818 = scalar_lea.vmem %s16, %s817
      %s819 = smul.u32 7, %s33
      %s820 = smul.u32 7, %s33
      %p821 = scmp.lt.s32.totalorder %s34, 1
      %s822 = scalar_select %p821, %s34, 1
      %p823 = scmp.lt.s32.totalorder %s820, 6
      %s824 = scalar_select %p823, %s820, 6
      %s825 = smul.addr %s822, 7
      %s826 = sadd.s32 %s824, %s825
      %s827 = smul.addr %s826, 8
      %s828 = scalar_lea.vmem %s17, %s827
      %s829 = smul.u32 7, %s33
      %v831 = vld [vmem:[%s746] sm:$0xf]
      %v832 = vld [vmem:[%s746 + $0x4] sm:$0xf]
      %v833 = vld [vmem:[%s746 + $0x8] sm:$0xf]
      %v834 = vld [vmem:[%s746 + $0xc] sm:$0xf]
      %v835 = vld [vmem:[%s746 + $0x10] sm:$0xf]
      %v836 = vld [vmem:[%s746 + $0x14] sm:$0xf]
      %v837 = vld [vmem:[%s746 + $0x18] sm:$0xf]
      %v838 = vld [vmem:[%s762] sm:$0xf]
      %v839 = vld [vmem:[%s762 + $0x4] sm:$0xf]
      %v840 = vld [vmem:[%s762 + $0x8] sm:$0xf]
      %v841 = vld [vmem:[%s765] sm:$0x1]
      %v843 = vlaneseq
      %v844 = vshrl.u32 %v843, 7
      %v845 = vsub.s32 0, %v844
      %v846 = vrot.slane %v841, %v845
      %v855 = vunpack.c.l.b16 %v831
      %v856 = vunpack.c.l.b16 %v832
      %v857 = vunpack.c.l.b16 %v833
      %v858 = vunpack.c.l.b16 %v834
      %v859 = vunpack.c.l.b16 %v835
      %v860 = vunpack.c.l.b16 %v836
      %v861 = vunpack.c.l.b16 %v837
      %v862 = vpack.c.b16 %v856, %v855
      %v863 = vpack.c.b16 %v858, %v857
      %v864 = vpack.c.b16 %v860, %v859
      %v865 = vpack.c.b16 %v861, %v861
      %v869 = vunpack.c.l.b16 %v838
      %v870 = vunpack.c.l.b16 %v839
      %v871 = vunpack.c.l.b16 %v840
      %v872 = vpack.c.b16 %v870, %v869
      %v873 = vpack.c.b16 %v871, %v871
      %vm875 = vcmask 195584
      %v877 = vsel %vm875, %v862, 0
      %v880 = vsel %vm875, %v863, 0
      %v883 = vsel %vm875, %v864, 0
      %v886 = vsel %vm875, %v865, 0
      %vm888 = vcmask 1043456
      %v890 = vsel %vm888, %v873, 0
      %892 = vmatprep.subr.bf16.mxu0 0
      %893 = vmatpush1.bf16.msra.mxu0 %v872
      %894 = vmatprep.subr.bf16.mxu0 0
      %895 = vmatpush1.bf16.msra.mxu0 %v890
      %896 = vmatprep.subr.bf16.mxu0 0
      %897 = vmatpush1.bf16.msra.mxu0 0
      %898 = vmatprep.subr.bf16.mxu0 0
      %899 = vmatpush1.bf16.msra.mxu0 0
      %900 = vmatprep.subr.bf16.mxu0 0
      %901 = vmatpush1.bf16.msra.mxu0 0
      %902 = vmatprep.subr.bf16.mxu0 0
      %903 = vmatpush1.bf16.msra.mxu0 0
      %904 = vmatprep.subr.bf16.mxu0 0
      %905 = vmatpush1.bf16.msra.mxu0 0
      %906 = vmatprep.subr.bf16.mxu0 0
      %907 = vmatpush1.bf16.msra.mxu0 0
      %908 = vmatprep.subr.bf16.mxu0 0
      %909 = vmatpush1.bf16.msra.mxu0 0
      %910 = vmatprep.subr.bf16.mxu0 0
      %911 = vmatpush1.bf16.msra.mxu0 0
      %912 = vmatprep.subr.bf16.mxu0 0
      %913 = vmatpush1.bf16.msra.mxu0 0
      %914 = vmatprep.subr.bf16.mxu0 0
      %915 = vmatpush1.bf16.msra.mxu0 0
      %916 = vmatprep.subr.bf16.mxu0 0
      %917 = vmatpush1.bf16.msra.mxu0 0
      %918 = vmatprep.subr.bf16.mxu0 0
      %919 = vmatpush1.bf16.msra.mxu0 0
      %920 = vmatprep.subr.bf16.mxu0 0
      %921 = vmatpush1.bf16.msra.mxu0 0
      %922 = vmatprep.subr.bf16.mxu0 0
      %923 = vmatpush1.bf16.msra.mxu0 0
      %924 = vmatprep.mubr.bf16.mxu0 0
      %925 = vmatmul.mubr.bf16.gmra.mrb[0].mxu0 %v877
      %v926 = vpop.f32.mrb[0].mxu0
      %v927 = vadd.f32 %v846, %v926
      %v928 = vpop.f32.mrb[0].mxu0
      %v929 = vpop.f32.mrb[0].mxu0
      %v930 = vadd.f32 %v846, %v929
      %v931 = vpop.f32.mrb[0].mxu0
      %932 = vmatprep.mubr.bf16.mxu0 0
      %933 = vmatmul.mubr.bf16.gmra.mrb[0].mxu0 %v880
      %v934 = vpop.f32.mrb[0].mxu0
      %v935 = vadd.f32 %v846, %v934
      %v936 = vpop.f32.mrb[0].mxu0
      %v937 = vpop.f32.mrb[0].mxu0
      %v938 = vadd.f32 %v846, %v937
      %v939 = vpop.f32.mrb[0].mxu0
      %940 = vmatprep.mubr.bf16.mxu0 0
      %941 = vmatmul.mubr.bf16.gmra.mrb[0].mxu0 %v883
      %v942 = vpop.f32.mrb[0].mxu0
      %v943 = vadd.f32 %v846, %v942
      %v944 = vpop.f32.mrb[0].mxu0
      %v945 = vpop.f32.mrb[0].mxu0
      %v946 = vadd.f32 %v846, %v945
      %v947 = vpop.f32.mrb[0].mxu0
      %948 = vmatprep.mubr.bf16.mxu0 0
      %949 = vmatmul.mubr.bf16.gmra.mrb[0].mxu0 %v886
      %v950 = vpop.f32.mrb[0].mxu0
      %v951 = vadd.f32 %v846, %v950
      %v952 = vpop.f32.mrb[0].mxu0
      %v953 = vpop.f32.mrb[0].mxu0
      %v954 = vpop.f32.mrb[0].mxu0
      %955 = vdwg.mxu0
      %v956 = vmax.f32 %v927, 0.0
      %v957 = vmax.f32 %v930, 0.0
      %v958 = vmax.f32 %v935, 0.0
      %v959 = vmax.f32 %v938, 0.0
      %v960 = vmax.f32 %v943, 0.0
      %v961 = vmax.f32 %v946, 0.0
      %v962 = vmax.f32 %v951, 0.0
      %v963 = vld [vmem:[%s770] sm:$0xf]
      %v964 = vld [vmem:[%s770 + $0x4] sm:$0xf]
      %v965 = vld [vmem:[%s770 + $0x8] sm:$0xf]
      %v966 = vld [vmem:[%s770 + $0xc] sm:$0xf]
      %v967 = vld [vmem:[%s773] sm:$0x1]
      %v968 = vpack.c.bf16 %v957, %v956
      %v969 = vpack.c.bf16 %v959, %v958
      %v970 = vpack.c.bf16 %v961, %v960
      %v971 = vpack.c.bf16 %v962, %v962
      %v973 = vlaneseq
      %v974 = vshrl.u32 %v973, 7
      %v975 = vsub.s32 0, %v974
      %v976 = vrot.slane %v967, %v975
      %v982 = vunpack.c.l.b16 %v963
      %v983 = vunpack.c.l.b16 %v964
      %v984 = vunpack.c.l.b16 %v965
      %v985 = vunpack.c.l.b16 %v966
      %v986 = vpack.c.b16 %v983, %v982
      %v987 = vpack.c.b16 %v985, %v984
      %vm990 = vcmask 261120
      %v992 = vsel %vm990, %v968, 0
      %v995 = vsel %vm990, %v969, 0
      %v998 = vsel %vm990, %v970, 0
      %v1001 = vsel %vm990, %v971, 0
      %1003 = vmatprep.subr.bf16.mxu0 0
      %1004 = vmatpush1.bf16.msra.mxu0 %v986
      %1005 = vmatprep.subr.bf16.mxu0 0
      %1006 = vmatpush1.bf16.msra.mxu0 %v987
      %1007 = vmatprep.subr.bf16.mxu0 0
      %1008 = vmatpush1.bf16.msra.mxu0 0
      %1009 = vmatprep.subr.bf16.mxu0 0
      %1010 = vmatpush1.bf16.msra.mxu0 0
      %1011 = vmatprep.subr.bf16.mxu0 0
      %1012 = vmatpush1.bf16.msra.mxu0 0
      %1013 = vmatprep.subr.bf16.mxu0 0
      %1014 = vmatpush1.bf16.msra.mxu0 0
      %1015 = vmatprep.subr.bf16.mxu0 0
      %1016 = vmatpush1.bf16.msra.mxu0 0
      %1017 = vmatprep.subr.bf16.mxu0 0
      %1018 = vmatpush1.bf16.msra.mxu0 0
      %1019 = vmatprep.subr.bf16.mxu0 0
      %1020 = vmatpush1.bf16.msra.mxu0 0
      %1021 = vmatprep.subr.bf16.mxu0 0
      %1022 = vmatpush1.bf16.msra.mxu0 0
      %1023 = vmatprep.subr.bf16.mxu0 0
      %1024 = vmatpush1.bf16.msra.mxu0 0
      %1025 = vmatprep.subr.bf16.mxu0 0
      %1026 = vmatpush1.bf16.msra.mxu0 0
      %1027 = vmatprep.subr.bf16.mxu0 0
      %1028 = vmatpush1.bf16.msra.mxu0 0
      %1029 = vmatprep.subr.bf16.mxu0 0
      %1030 = vmatpush1.bf16.msra.mxu0 0
      %1031 = vmatprep.subr.bf16.mxu0 0
      %1032 = vmatpush1.bf16.msra.mxu0 0
      %1033 = vmatprep.subr.bf16.mxu0 0
      %1034 = vmatpush1.bf16.msra.mxu0 0
      %1035 = vmatprep.mubr.bf16.mxu0 0
      %1036 = vmatmul.mubr.bf16.gmra.mrb[0].mxu0 %v992
      %v1037 = vpop.f32.mrb[0].mxu0
      %v1038 = vadd.f32 %v976, %v1037
      %v1039 = vpop.f32.mrb[0].mxu0
      %v1040 = vpop.f32.mrb[0].mxu0
      %v1041 = vadd.f32 %v976, %v1040
      %v1042 = vpop.f32.mrb[0].mxu0
      %1043 = vmatprep.mubr.bf16.mxu0 0
      %1044 = vmatmul.mubr.bf16.gmra.mrb[0].mxu0 %v995
      %v1045 = vpop.f32.mrb[0].mxu0
      %v1046 = vadd.f32 %v976, %v1045
      %v1047 = vpop.f32.mrb[0].mxu0
      %v1048 = vpop.f32.mrb[0].mxu0
      %v1049 = vadd.f32 %v976, %v1048
      %v1050 = vpop.f32.mrb[0].mxu0
      %1051 = vmatprep.mubr.bf16.mxu0 0
      %1052 = vmatmul.mubr.bf16.gmra.mrb[0].mxu0 %v998
      %v1053 = vpop.f32.mrb[0].mxu0
      %v1054 = vadd.f32 %v976, %v1053
      %v1055 = vpop.f32.mrb[0].mxu0
      %v1056 = vpop.f32.mrb[0].mxu0
      %v1057 = vadd.f32 %v976, %v1056
      %v1058 = vpop.f32.mrb[0].mxu0
      %1059 = vmatprep.mubr.bf16.mxu0 0
      %1060 = vmatmul.mubr.bf16.gmra.mrb[0].mxu0 %v1001
      %v1061 = vpop.f32.mrb[0].mxu0
      %v1062 = vadd.f32 %v976, %v1061
      %v1063 = vpop.f32.mrb[0].mxu0
      %v1064 = vpop.f32.mrb[0].mxu0
      %v1065 = vpop.f32.mrb[0].mxu0
      %1066 = vdwg.mxu0
      %v1067 = vmax.f32 %v1038, 0.0
      %v1068 = vmax.f32 %v1041, 0.0
      %v1069 = vmax.f32 %v1046, 0.0
      %v1070 = vmax.f32 %v1049, 0.0
      %v1071 = vmax.f32 %v1054, 0.0
      %v1072 = vmax.f32 %v1057, 0.0
      %v1073 = vmax.f32 %v1062, 0.0
      %v1074 = vld [vmem:[%s778] sm:$0xf]
      %v1075 = vld [vmem:[%s778 + $0x4] sm:$0xf]
      %v1076 = vld [vmem:[%s778 + $0x8] sm:$0xf]
      %v1077 = vld [vmem:[%s778 + $0xc] sm:$0xf]
      %v1078 = vld [vmem:[%s781] sm:$0x1]
      %v1079 = vpack.c.bf16 %v1068, %v1067
      %v1080 = vpack.c.bf16 %v1070, %v1069
      %v1081 = vpack.c.bf16 %v1072, %v1071
      %v1082 = vpack.c.bf16 %v1073, %v1073
      %v1084 = vlaneseq
      %v1085 = vshrl.u32 %v1084, 7
      %v1086 = vsub.s32 0, %v1085
      %v1087 = vrot.slane %v1078, %v1086
      %v1093 = vunpack.c.l.b16 %v1074
      %v1094 = vunpack.c.l.b16 %v1075
      %v1095 = vunpack.c.l.b16 %v1076
      %v1096 = vunpack.c.l.b16 %v1077
      %v1097 = vpack.c.b16 %v1094, %v1093
      %v1098 = vpack.c.b16 %v1096, %v1095
      %v1102 = vsel %vm990, %v1079, 0
      %v1105 = vsel %vm990, %v1080, 0
      %v1108 = vsel %vm990, %v1081, 0
      %v1111 = vsel %vm990, %v1082, 0
      %1113 = vmatprep.subr.bf16.mxu0 0
      %1114 = vmatpush1.bf16.msra.mxu0 %v1097
      %1115 = vmatprep.subr.bf16.mxu0 0
      %1116 = vmatpush1.bf16.msra.mxu0 %v1098
      %1117 = vmatprep.subr.bf16.mxu0 0
      %1118 = vmatpush1.bf16.msra.mxu0 0
      %1119 = vmatprep.subr.bf16.mxu0 0
      %1120 = vmatpush1.bf16.msra.mxu0 0
      %1121 = vmatprep.subr.bf16.mxu0 0
      %1122 = vmatpush1.bf16.msra.mxu0 0
      %1123 = vmatprep.subr.bf16.mxu0 0
      %1124 = vmatpush1.bf16.msra.mxu0 0
      %1125 = vmatprep.subr.bf16.mxu0 0
      %1126 = vmatpush1.bf16.msra.mxu0 0
      %1127 = vmatprep.subr.bf16.mxu0 0
      %1128 = vmatpush1.bf16.msra.mxu0 0
      %1129 = vmatprep.subr.bf16.mxu0 0
      %1130 = vmatpush1.bf16.msra.mxu0 0
      %1131 = vmatprep.subr.bf16.mxu0 0
      %1132 = vmatpush1.bf16.msra.mxu0 0
      %1133 = vmatprep.subr.bf16.mxu0 0
      %1134 = vmatpush1.bf16.msra.mxu0 0
      %1135 = vmatprep.subr.bf16.mxu0 0
      %1136 = vmatpush1.bf16.msra.mxu0 0
      %1137 = vmatprep.subr.bf16.mxu0 0
      %1138 = vmatpush1.bf16.msra.mxu0 0
      %1139 = vmatprep.subr.bf16.mxu0 0
      %1140 = vmatpush1.bf16.msra.mxu0 0
      %1141 = vmatprep.subr.bf16.mxu0 0
      %1142 = vmatpush1.bf16.msra.mxu0 0
      %1143 = vmatprep.subr.bf16.mxu0 0
      %1144 = vmatpush1.bf16.msra.mxu0 0
      %1145 = vmatprep.mubr.bf16.mxu0 0
      %1146 = vmatmul.mubr.bf16.gmra.mrb[0].mxu0 %v1102
      %v1147 = vpop.f32.mrb[0].mxu0
      %v1148 = vadd.f32 %v1087, %v1147
      %v1149 = vpop.f32.mrb[0].mxu0
      %v1150 = vpop.f32.mrb[0].mxu0
      %v1151 = vadd.f32 %v1087, %v1150
      %v1152 = vpop.f32.mrb[0].mxu0
      %1153 = vmatprep.mubr.bf16.mxu0 0
      %1154 = vmatmul.mubr.bf16.gmra.mrb[0].mxu0 %v1105
      %v1155 = vpop.f32.mrb[0].mxu0
      %v1156 = vadd.f32 %v1087, %v1155
      %v1157 = vpop.f32.mrb[0].mxu0
      %v1158 = vpop.f32.mrb[0].mxu0
      %v1159 = vadd.f32 %v1087, %v1158
      %v1160 = vpop.f32.mrb[0].mxu0
      %1161 = vmatprep.mubr.bf16.mxu0 0
      %1162 = vmatmul.mubr.bf16.gmra.mrb[0].mxu0 %v1108
      %v1163 = vpop.f32.mrb[0].mxu0
      %v1164 = vadd.f32 %v1087, %v1163
      %v1165 = vpop.f32.mrb[0].mxu0
      %v1166 = vpop.f32.mrb[0].mxu0
      %v1167 = vadd.f32 %v1087, %v1166
      %v1168 = vpop.f32.mrb[0].mxu0
      %1169 = vmatprep.mubr.bf16.mxu0 0
      %1170 = vmatmul.mubr.bf16.gmra.mrb[0].mxu0 %v1111
      %v1171 = vpop.f32.mrb[0].mxu0
      %v1172 = vadd.f32 %v1087, %v1171
      %v1173 = vpop.f32.mrb[0].mxu0
      %v1174 = vpop.f32.mrb[0].mxu0
      %v1175 = vpop.f32.mrb[0].mxu0
      %1176 = vdwg.mxu0
      %v1177 = vmax.f32 %v1148, 0.0
      %v1178 = vmax.f32 %v1151, 0.0
      %v1179 = vmax.f32 %v1156, 0.0
      %v1180 = vmax.f32 %v1159, 0.0
      %v1181 = vmax.f32 %v1164, 0.0
      %v1182 = vmax.f32 %v1167, 0.0
      %v1183 = vmax.f32 %v1172, 0.0
      %v1184 = vld [vmem:[%s786] sm:$0xf]
      %v1185 = vld [vmem:[%s786 + $0x4] sm:$0xf]
      %v1186 = vld [vmem:[%s789] sm:$0x1]
      %v1187 = vpack.c.bf16 %v1178, %v1177
      %v1188 = vpack.c.bf16 %v1180, %v1179
      %v1189 = vpack.c.bf16 %v1182, %v1181
      %v1190 = vpack.c.bf16 %v1183, %v1183
      %v1192 = vlaneseq
      %v1193 = vshrl.u32 %v1192, 7
      %v1194 = vsub.s32 0, %v1193
      %v1195 = vrot.slane %v1186, %v1194
      %v1199 = vunpack.c.l.b16 %v1184
      %v1200 = vunpack.c.l.b16 %v1185
      %v1201 = vpack.c.b16 %v1200, %v1199
      %vm1203 = vcmask 130048
      %v1205 = vsel %vm1203, %v1187, 0
      %v1208 = vsel %vm1203, %v1188, 0
      %v1211 = vsel %vm1203, %v1189, 0
      %v1214 = vsel %vm1203, %v1190, 0
      %1216 = vmatprep.subr.bf16.mxu0 0
      %1217 = vmatpush1.bf16.msra.mxu0 %v1201
      %1218 = vmatprep.subr.bf16.mxu0 0
      %1219 = vmatpush1.bf16.msra.mxu0 0
      %1220 = vmatprep.subr.bf16.mxu0 0
      %1221 = vmatpush1.bf16.msra.mxu0 0
      %1222 = vmatprep.subr.bf16.mxu0 0
      %1223 = vmatpush1.bf16.msra.mxu0 0
      %1224 = vmatprep.subr.bf16.mxu0 0
      %1225 = vmatpush1.bf16.msra.mxu0 0
      %1226 = vmatprep.subr.bf16.mxu0 0
      %1227 = vmatpush1.bf16.msra.mxu0 0
      %1228 = vmatprep.subr.bf16.mxu0 0
      %1229 = vmatpush1.bf16.msra.mxu0 0
      %1230 = vmatprep.subr.bf16.mxu0 0
      %1231 = vmatpush1.bf16.msra.mxu0 0
      %1232 = vmatprep.subr.bf16.mxu0 0
      %1233 = vmatpush1.bf16.msra.mxu0 0
      %1234 = vmatprep.subr.bf16.mxu0 0
      %1235 = vmatpush1.bf16.msra.mxu0 0
      %1236 = vmatprep.subr.bf16.mxu0 0
      %1237 = vmatpush1.bf16.msra.mxu0 0
      %1238 = vmatprep.subr.bf16.mxu0 0
      %1239 = vmatpush1.bf16.msra.mxu0 0
      %1240 = vmatprep.subr.bf16.mxu0 0
      %1241 = vmatpush1.bf16.msra.mxu0 0
      %1242 = vmatprep.subr.bf16.mxu0 0
      %1243 = vmatpush1.bf16.msra.mxu0 0
      %1244 = vmatprep.subr.bf16.mxu0 0
      %1245 = vmatpush1.bf16.msra.mxu0 0
      %1246 = vmatprep.subr.bf16.mxu0 0
      %1247 = vmatpush1.bf16.msra.mxu0 0
      %1248 = vmatprep.mubr.bf16.mxu0 0
      %1249 = vmatmul.mubr.bf16.gmra.mrb[0].mxu0 %v1205
      %v1250 = vpop.f32.mrb[0].mxu0
      %v1251 = vadd.f32 %v1195, %v1250
      %v1252 = vpop.f32.mrb[0].mxu0
      %v1253 = vpop.f32.mrb[0].mxu0
      %v1254 = vadd.f32 %v1195, %v1253
      %v1255 = vpop.f32.mrb[0].mxu0
      %1256 = vmatprep.mubr.bf16.mxu0 0
      %1257 = vmatmul.mubr.bf16.gmra.mrb[0].mxu0 %v1208
      %v1258 = vpop.f32.mrb[0].mxu0
      %v1259 = vadd.f32 %v1195, %v1258
      %v1260 = vpop.f32.mrb[0].mxu0
      %v1261 = vpop.f32.mrb[0].mxu0
      %v1262 = vadd.f32 %v1195, %v1261
      %v1263 = vpop.f32.mrb[0].mxu0
      %1264 = vmatprep.mubr.bf16.mxu0 0
      %1265 = vmatmul.mubr.bf16.gmra.mrb[0].mxu0 %v1211
      %v1266 = vpop.f32.mrb[0].mxu0
      %v1267 = vadd.f32 %v1195, %v1266
      %v1268 = vpop.f32.mrb[0].mxu0
      %v1269 = vpop.f32.mrb[0].mxu0
      %v1270 = vadd.f32 %v1195, %v1269
      %v1271 = vpop.f32.mrb[0].mxu0
      %1272 = vmatprep.mubr.bf16.mxu0 0
      %1273 = vmatmul.mubr.bf16.gmra.mrb[0].mxu0 %v1214
      %v1274 = vpop.f32.mrb[0].mxu0
      %v1275 = vadd.f32 %v1195, %v1274
      %v1276 = vpop.f32.mrb[0].mxu0
      %v1277 = vpop.f32.mrb[0].mxu0
      %v1278 = vpop.f32.mrb[0].mxu0
      %1279 = vdwg.mxu0
      %v1280 = vmul.f32 %v1251, 0.5
      %v1281 = vmul.f32 %v1254, 0.5
      %v1282 = vmul.f32 %v1259, 0.5
      %v1283 = vmul.f32 %v1262, 0.5
      %v1284 = vmul.f32 %v1267, 0.5
      %v1285 = vmul.f32 %v1270, 0.5
      %v1286 = vmul.f32 %v1275, 0.5
      %v1287 = vmul.f32 %v1280, 1.442695
      %v1288 = vpow.pop %v1287
      %v1289 = vmul.f32 %v1281, 1.442695
      %v1290 = vpow.pop %v1289
      %v1291 = vmul.f32 %v1282, 1.442695
      %v1292 = vpow.pop %v1291
      %v1293 = vmul.f32 %v1283, 1.442695
      %v1294 = vpow.pop %v1293
      %v1295 = vmul.f32 %v1284, 1.442695
      %v1296 = vpow.pop %v1295
      %v1297 = vmul.f32 %v1285, 1.442695
      %v1298 = vpow.pop %v1297
      %v1299 = vmul.f32 %v1286, 1.442695
      %v1300 = vpow.pop %v1299
      %v1301 = vld [vmem:[%s756] sm:$0xff]
      %v1302 = vld [vmem:[%s756 + $0x8] sm:$0xff]
      %v1303 = vld [vmem:[%s756 + $0x10] sm:$0xff]
      %v1304 = vld [vmem:[%s756 + $0x18] sm:$0xff]
      %v1305 = vld [vmem:[%s756 + $0x20] sm:$0xff]
      %v1306 = vld [vmem:[%s756 + $0x28] sm:$0xff]
      %v1307 = vld [vmem:[%s756 + $0x30] sm:$0xff]
      %1315 = vrot.lane.b32.xlu0 %v1301, 8
      %v1316 = vpop.permute.xlu0 %1315
      %1317 = vrot.lane.b32.xlu0 %v1302, 8
      %v1318 = vpop.permute.xlu0 %1317
      %1319 = vrot.lane.b32.xlu0 %v1303, 8
      %v1320 = vpop.permute.xlu0 %1319
      %1321 = vrot.lane.b32.xlu0 %v1304, 8
      %v1322 = vpop.permute.xlu0 %1321
      %1323 = vrot.lane.b32.xlu0 %v1305, 8
      %v1324 = vpop.permute.xlu0 %1323
      %1325 = vrot.lane.b32.xlu0 %v1306, 8
      %v1326 = vpop.permute.xlu0 %1325
      %1327 = vrot.lane.b32.xlu0 %v1307, 8
      %v1328 = vpop.permute.xlu0 %1327
      %v1336 = vmul.f32 %v1288, %v1316
      %v1337 = vmul.f32 %v1290, %v1318
      %v1338 = vmul.f32 %v1292, %v1320
      %v1339 = vmul.f32 %v1294, %v1322
      %v1340 = vmul.f32 %v1296, %v1324
      %v1341 = vmul.f32 %v1298, %v1326
      %v1342 = vmul.f32 %v1300, %v1328
      %1350 = vrot.lane.b32.xlu0 %v1336, 120
      %v1351 = vpop.permute.xlu0 %1350
      %1352 = vrot.lane.b32.xlu0 %v1337, 120
      %v1353 = vpop.permute.xlu0 %1352
      %1354 = vrot.lane.b32.xlu0 %v1338, 120
      %v1355 = vpop.permute.xlu0 %1354
      %1356 = vrot.lane.b32.xlu0 %v1339, 120
      %v1357 = vpop.permute.xlu0 %1356
      %1358 = vrot.lane.b32.xlu0 %v1340, 120
      %v1359 = vpop.permute.xlu0 %1358
      %1360 = vrot.lane.b32.xlu0 %v1341, 120
      %v1361 = vpop.permute.xlu0 %1360
      %1362 = vrot.lane.b32.xlu0 %v1342, 120
      %v1363 = vpop.permute.xlu0 %1362
      %v1371 = vadd.f32 %v1251, %v1351
      %v1372 = vadd.f32 %v1254, %v1353
      %v1373 = vadd.f32 %v1259, %v1355
      %v1374 = vadd.f32 %v1262, %v1357
      %v1375 = vadd.f32 %v1267, %v1359
      %v1376 = vadd.f32 %v1270, %v1361
      %v1377 = vadd.f32 %v1275, %v1363
      %v1378 = vld [vmem:[%s10] sm:$0xf]
      %v1379 = vld [vmem:[%s11] sm:$0x1]
      %v1380 = vpack.c.bf16 %v1372, %v1371
      %v1381 = vpack.c.bf16 %v1374, %v1373
      %v1382 = vpack.c.bf16 %v1376, %v1375
      %v1383 = vpack.c.bf16 %v1377, %v1377
      %v1385 = vlaneseq
      %v1386 = vshrl.u32 %v1385, 7
      %v1387 = vsub.s32 0, %v1386
      %v1388 = vrot.slane %v1379, %v1387
      %vm1390 = vcmask 64512
      %v1392 = vsel %vm1390, %v1380, 0
      %v1395 = vsel %vm1390, %v1381, 0
      %v1398 = vsel %vm1390, %v1382, 0
      %v1401 = vsel %vm1390, %v1383, 0
      %v1404 = vsel %vm888, %v1378, 0
      %1406 = vmatprep.subr.bf16.mxu0 0
      %1407 = vmatpush1.bf16.msra.mxu0 %v1404
      %1408 = vmatprep.subr.bf16.mxu0 0
      %1409 = vmatpush1.bf16.msra.mxu0 0
      %1410 = vmatprep.subr.bf16.mxu0 0
      %1411 = vmatpush1.bf16.msra.mxu0 0
      %1412 = vmatprep.subr.bf16.mxu0 0
      %1413 = vmatpush1.bf16.msra.mxu0 0
      %1414 = vmatprep.subr.bf16.mxu0 0
      %1415 = vmatpush1.bf16.msra.mxu0 0
      %1416 = vmatprep.subr.bf16.mxu0 0
      %1417 = vmatpush1.bf16.msra.mxu0 0
      %1418 = vmatprep.subr.bf16.mxu0 0
      %1419 = vmatpush1.bf16.msra.mxu0 0
      %1420 = vmatprep.subr.bf16.mxu0 0
      %1421 = vmatpush1.bf16.msra.mxu0 0
      %1422 = vmatprep.subr.bf16.mxu0 0
      %1423 = vmatpush1.bf16.msra.mxu0 0
      %1424 = vmatprep.subr.bf16.mxu0 0
      %1425 = vmatpush1.bf16.msra.mxu0 0
      %1426 = vmatprep.subr.bf16.mxu0 0
      %1427 = vmatpush1.bf16.msra.mxu0 0
      %1428 = vmatprep.subr.bf16.mxu0 0
      %1429 = vmatpush1.bf16.msra.mxu0 0
      %1430 = vmatprep.subr.bf16.mxu0 0
      %1431 = vmatpush1.bf16.msra.mxu0 0
      %1432 = vmatprep.subr.bf16.mxu0 0
      %1433 = vmatpush1.bf16.msra.mxu0 0
      %1434 = vmatprep.subr.bf16.mxu0 0
      %1435 = vmatpush1.bf16.msra.mxu0 0
      %1436 = vmatprep.subr.bf16.mxu0 0
      %1437 = vmatpush1.bf16.msra.mxu0 0
      %1438 = vmatprep.mubr.bf16.mxu0 0
      %1439 = vmatmul.mubr.bf16.gmra.mrb[0].mxu0 %v1392
      %v1440 = vpop.f32.mrb[0].mxu0
      %v1441 = vadd.f32 %v1388, %v1440
      %v1442 = vpop.f32.mrb[0].mxu0
      %v1443 = vpop.f32.mrb[0].mxu0
      %v1444 = vadd.f32 %v1388, %v1443
      %v1445 = vpop.f32.mrb[0].mxu0
      %1446 = vmatprep.mubr.bf16.mxu0 0
      %1447 = vmatmul.mubr.bf16.gmra.mrb[0].mxu0 %v1395
      %v1448 = vpop.f32.mrb[0].mxu0
      %v1449 = vadd.f32 %v1388, %v1448
      %v1450 = vpop.f32.mrb[0].mxu0
      %v1451 = vpop.f32.mrb[0].mxu0
      %v1452 = vadd.f32 %v1388, %v1451
      %v1453 = vpop.f32.mrb[0].mxu0
      %1454 = vmatprep.mubr.bf16.mxu0 0
      %1455 = vmatmul.mubr.bf16.gmra.mrb[0].mxu0 %v1398
      %v1456 = vpop.f32.mrb[0].mxu0
      %v1457 = vadd.f32 %v1388, %v1456
      %v1458 = vpop.f32.mrb[0].mxu0
      %v1459 = vpop.f32.mrb[0].mxu0
      %v1460 = vadd.f32 %v1388, %v1459
      %v1461 = vpop.f32.mrb[0].mxu0
      %1462 = vmatprep.mubr.bf16.mxu0 0
      %1463 = vmatmul.mubr.bf16.gmra.mrb[0].mxu0 %v1401
      %v1464 = vpop.f32.mrb[0].mxu0
      %v1465 = vadd.f32 %v1388, %v1464
      %v1466 = vpop.f32.mrb[0].mxu0
      %v1467 = vpop.f32.mrb[0].mxu0
      %v1468 = vpop.f32.mrb[0].mxu0
      %1469 = vdwg.mxu0
      %v1470 = vmax.f32 %v1441, 0.0
      %v1471 = vmax.f32 %v1444, 0.0
      %v1472 = vmax.f32 %v1449, 0.0
      %v1473 = vmax.f32 %v1452, 0.0
      %v1474 = vmax.f32 %v1457, 0.0
      %v1475 = vmax.f32 %v1460, 0.0
      %v1476 = vmax.f32 %v1465, 0.0
      %v1477 = vld [vmem:[%s12] sm:$0x1]
      %v1478 = vld [vmem:[%s13] sm:$0x1]
      %v1479 = vpack.c.bf16 %v1471, %v1470
      %v1480 = vpack.c.bf16 %v1473, %v1472
      %v1481 = vpack.c.bf16 %v1475, %v1474
      %v1482 = vpack.c.bf16 %v1476, %v1476
      %v1484 = vlaneseq
      %v1485 = vshrl.u32 %v1484, 7
      %v1486 = vsub.s32 0, %v1485
      %v1487 = vrot.slane %v1478, %v1486
      %vm1489 = vcmask 15360
      %v1491 = vsel %vm1489, %v1479, 0
      %v1494 = vsel %vm1489, %v1480, 0
      %v1497 = vsel %vm1489, %v1481, 0
      %v1500 = vsel %vm1489, %v1482, 0
      %vm1502 = vcmask 1040384
      %v1504 = vsel %vm1502, %v1477, 0
      %1506 = vmatprep.subr.bf16.mxu0 0
      %1507 = vmatpush1.bf16.msra.mxu0 %v1504
      %1508 = vmatprep.subr.bf16.mxu0 0
      %1509 = vmatpush1.bf16.msra.mxu0 0
      %1510 = vmatprep.subr.bf16.mxu0 0
      %1511 = vmatpush1.bf16.msra.mxu0 0
      %1512 = vmatprep.subr.bf16.mxu0 0
      %1513 = vmatpush1.bf16.msra.mxu0 0
      %1514 = vmatprep.subr.bf16.mxu0 0
      %1515 = vmatpush1.bf16.msra.mxu0 0
      %1516 = vmatprep.subr.bf16.mxu0 0
      %1517 = vmatpush1.bf16.msra.mxu0 0
      %1518 = vmatprep.subr.bf16.mxu0 0
      %1519 = vmatpush1.bf16.msra.mxu0 0
      %1520 = vmatprep.subr.bf16.mxu0 0
      %1521 = vmatpush1.bf16.msra.mxu0 0
      %1522 = vmatprep.subr.bf16.mxu0 0
      %1523 = vmatpush1.bf16.msra.mxu0 0
      %1524 = vmatprep.subr.bf16.mxu0 0
      %1525 = vmatpush1.bf16.msra.mxu0 0
      %1526 = vmatprep.subr.bf16.mxu0 0
      %1527 = vmatpush1.bf16.msra.mxu0 0
      %1528 = vmatprep.subr.bf16.mxu0 0
      %1529 = vmatpush1.bf16.msra.mxu0 0
      %1530 = vmatprep.subr.bf16.mxu0 0
      %1531 = vmatpush1.bf16.msra.mxu0 0
      %1532 = vmatprep.subr.bf16.mxu0 0
      %1533 = vmatpush1.bf16.msra.mxu0 0
      %1534 = vmatprep.subr.bf16.mxu0 0
      %1535 = vmatpush1.bf16.msra.mxu0 0
      %1536 = vmatprep.subr.bf16.mxu0 0
      %1537 = vmatpush1.bf16.msra.mxu0 0
      %1538 = vmatprep.mubr.bf16.mxu0 0
      %1539 = vmatmul.mubr.bf16.gmra.mrb[0].mxu0 %v1491
      %v1540 = vpop.f32.mrb[0].mxu0
      %v1541 = vadd.f32 %v1487, %v1540
      %v1542 = vpop.f32.mrb[0].mxu0
      %v1543 = vpop.f32.mrb[0].mxu0
      %v1544 = vadd.f32 %v1487, %v1543
      %v1545 = vpop.f32.mrb[0].mxu0
      %1546 = vmatprep.mubr.bf16.mxu0 0
      %1547 = vmatmul.mubr.bf16.gmra.mrb[0].mxu0 %v1494
      %v1548 = vpop.f32.mrb[0].mxu0
      %v1549 = vadd.f32 %v1487, %v1548
      %v1550 = vpop.f32.mrb[0].mxu0
      %v1551 = vpop.f32.mrb[0].mxu0
      %v1552 = vadd.f32 %v1487, %v1551
      %v1553 = vpop.f32.mrb[0].mxu0
      %1554 = vmatprep.mubr.bf16.mxu0 0
      %1555 = vmatmul.mubr.bf16.gmra.mrb[0].mxu0 %v1497
      %v1556 = vpop.f32.mrb[0].mxu0
      %v1557 = vadd.f32 %v1487, %v1556
      %v1558 = vpop.f32.mrb[0].mxu0
      %v1559 = vpop.f32.mrb[0].mxu0
      %v1560 = vadd.f32 %v1487, %v1559
      %v1561 = vpop.f32.mrb[0].mxu0
      %1562 = vmatprep.mubr.bf16.mxu0 0
      %1563 = vmatmul.mubr.bf16.gmra.mrb[0].mxu0 %v1500
      %v1564 = vpop.f32.mrb[0].mxu0
      %v1565 = vadd.f32 %v1487, %v1564
      %v1566 = vpop.f32.mrb[0].mxu0
      %v1567 = vpop.f32.mrb[0].mxu0
      %v1568 = vpop.f32.mrb[0].mxu0
      %1569 = vdwg.mxu0
      %vm1570 = vcmask 31744
      %v1571 = vsel %vm1570, %v1541, -inf
      %1572 = vmax.xlane.f32.xlu0 %v1571
      %v1573 = vpop.xlane.xlu0 %1572
      %v1574 = vsel %vm1570, %v1544, -inf
      %1575 = vmax.xlane.f32.xlu0 %v1574
      %v1576 = vpop.xlane.xlu0 %1575
      %v1577 = vsel %vm1570, %v1549, -inf
      %1578 = vmax.xlane.f32.xlu0 %v1577
      %v1579 = vpop.xlane.xlu0 %1578
      %v1580 = vsel %vm1570, %v1552, -inf
      %1581 = vmax.xlane.f32.xlu0 %v1580
      %v1582 = vpop.xlane.xlu0 %1581
      %v1583 = vsel %vm1570, %v1557, -inf
      %1584 = vmax.xlane.f32.xlu0 %v1583
      %v1585 = vpop.xlane.xlu0 %1584
      %v1586 = vsel %vm1570, %v1560, -inf
      %1587 = vmax.xlane.f32.xlu0 %v1586
      %v1588 = vpop.xlane.xlu0 %1587
      %v1589 = vsel %vm1570, %v1565, -inf
      %1590 = vmax.xlane.f32.xlu0 %v1589
      %v1591 = vpop.xlane.xlu0 %1590
      %v1592 = vsub.f32 %v1541, %v1573
      %v1593 = vsub.f32 %v1544, %v1576
      %v1594 = vsub.f32 %v1549, %v1579
      %v1595 = vsub.f32 %v1552, %v1582
      %v1596 = vsub.f32 %v1557, %v1585
      %v1597 = vsub.f32 %v1560, %v1588
      %v1598 = vsub.f32 %v1565, %v1591
      %v1599 = vmul.f32 %v1592, 1.442695
      %v1600 = vpow.pop %v1599
      %v1601 = vmul.f32 %v1593, 1.442695
      %v1602 = vpow.pop %v1601
      %v1603 = vmul.f32 %v1594, 1.442695
      %v1604 = vpow.pop %v1603
      %v1605 = vmul.f32 %v1595, 1.442695
      %v1606 = vpow.pop %v1605
      %v1607 = vmul.f32 %v1596, 1.442695
      %v1608 = vpow.pop %v1607
      %v1609 = vmul.f32 %v1597, 1.442695
      %v1610 = vpow.pop %v1609
      %v1611 = vmul.f32 %v1598, 1.442695
      %v1612 = vpow.pop %v1611
      %v1613 = vsel %vm1570, %v1600, 0.0
      %1614 = vadd.xlane.f32.xlu0 %v1613
      %v1615 = vpop.xlane.xlu0 %1614
      %v1616 = vsel %vm1570, %v1602, 0.0
      %1617 = vadd.xlane.f32.xlu0 %v1616
      %v1618 = vpop.xlane.xlu0 %1617
      %v1619 = vsel %vm1570, %v1604, 0.0
      %1620 = vadd.xlane.f32.xlu0 %v1619
      %v1621 = vpop.xlane.xlu0 %1620
      %v1622 = vsel %vm1570, %v1606, 0.0
      %1623 = vadd.xlane.f32.xlu0 %v1622
      %v1624 = vpop.xlane.xlu0 %1623
      %v1625 = vsel %vm1570, %v1608, 0.0
      %1626 = vadd.xlane.f32.xlu0 %v1625
      %v1627 = vpop.xlane.xlu0 %1626
      %v1628 = vsel %vm1570, %v1610, 0.0
      %1629 = vadd.xlane.f32.xlu0 %v1628
      %v1630 = vpop.xlane.xlu0 %1629
      %v1631 = vsel %vm1570, %v1612, 0.0
      %1632 = vadd.xlane.f32.xlu0 %v1631
      %v1633 = vpop.xlane.xlu0 %1632
      %v1634 = vrcp.pop %v1615
      %v1635 = vrcp.pop %v1618
      %v1636 = vrcp.pop %v1621
      %v1637 = vrcp.pop %v1624
      %v1638 = vrcp.pop %v1627
      %v1639 = vrcp.pop %v1630
      %v1640 = vrcp.pop %v1633
      %v1641 = vmul.f32 %v1600, %v1634
      %v1642 = vmul.f32 %v1602, %v1635
      %v1643 = vmul.f32 %v1604, %v1636
      %v1644 = vmul.f32 %v1606, %v1637
      %v1645 = vmul.f32 %v1608, %v1638
      %v1646 = vmul.f32 %v1610, %v1639
      %v1647 = vmul.f32 %v1612, %v1640
      %1648 = vst.msk [vmem:[%s798] sm:$0xff] %vm1390, %v1251
      %1649 = vst.msk [vmem:[%s798 + $0x8] sm:$0xff] %vm1390, %v1254
      %1650 = vst.msk [vmem:[%s798 + $0x10] sm:$0xff] %vm1390, %v1259
      %1651 = vst.msk [vmem:[%s798 + $0x18] sm:$0xff] %vm1390, %v1262
      %1652 = vst.msk [vmem:[%s798 + $0x20] sm:$0xff] %vm1390, %v1267
      %1653 = vst.msk [vmem:[%s798 + $0x28] sm:$0xff] %vm1390, %v1270
      %1654 = vst.msk [vmem:[%s798 + $0x30] sm:$0xff] %vm1390, %v1275
      %1662 = vrot.lane.b32.xlu0 %v1288, 120
      %v1663 = vpop.permute.xlu0 %1662
      %1664 = vrot.lane.b32.xlu0 %v1290, 120
      %v1665 = vpop.permute.xlu0 %1664
      %1666 = vrot.lane.b32.xlu0 %v1292, 120
      %v1667 = vpop.permute.xlu0 %1666
      %1668 = vrot.lane.b32.xlu0 %v1294, 120
      %v1669 = vpop.permute.xlu0 %1668
      %1670 = vrot.lane.b32.xlu0 %v1296, 120
      %v1671 = vpop.permute.xlu0 %1670
      %1672 = vrot.lane.b32.xlu0 %v1298, 120
      %v1673 = vpop.permute.xlu0 %1672
      %1674 = vrot.lane.b32.xlu0 %v1300, 120
      %v1675 = vpop.permute.xlu0 %1674
      %1683 = vst.msk [vmem:[%s808] sm:$0xff] %vm1390, %v1663
      %1684 = vst.msk [vmem:[%s808 + $0x8] sm:$0xff] %vm1390, %v1665
      %1685 = vst.msk [vmem:[%s808 + $0x10] sm:$0xff] %vm1390, %v1667
      %1686 = vst.msk [vmem:[%s808 + $0x18] sm:$0xff] %vm1390, %v1669
      %1687 = vst.msk [vmem:[%s808 + $0x20] sm:$0xff] %vm1390, %v1671
      %1688 = vst.msk [vmem:[%s808 + $0x28] sm:$0xff] %vm1390, %v1673
      %1689 = vst.msk [vmem:[%s808 + $0x30] sm:$0xff] %vm1390, %v1675
      %1690 = vst.msk [vmem:[%s818] sm:$0xff] %vm1390, %v1371
      %1691 = vst.msk [vmem:[%s818 + $0x8] sm:$0xff] %vm1390, %v1372
      %1692 = vst.msk [vmem:[%s818 + $0x10] sm:$0xff] %vm1390, %v1373
      %1693 = vst.msk [vmem:[%s818 + $0x18] sm:$0xff] %vm1390, %v1374
      %1694 = vst.msk [vmem:[%s818 + $0x20] sm:$0xff] %vm1390, %v1375
      %1695 = vst.msk [vmem:[%s818 + $0x28] sm:$0xff] %vm1390, %v1376
      %1696 = vst.msk [vmem:[%s818 + $0x30] sm:$0xff] %vm1390, %v1377
      %1697 = vst.msk [vmem:[%s828] sm:$0xff] %vm1570, %v1641
      %1698 = vst.msk [vmem:[%s828 + $0x8] sm:$0xff] %vm1570, %v1642
      %1699 = vst.msk [vmem:[%s828 + $0x10] sm:$0xff] %vm1570, %v1643
      %1700 = vst.msk [vmem:[%s828 + $0x18] sm:$0xff] %vm1570, %v1644
      %1701 = vst.msk [vmem:[%s828 + $0x20] sm:$0xff] %vm1570, %v1645
      %1702 = vst.msk [vmem:[%s828 + $0x28] sm:$0xff] %vm1570, %v1646
      %1703 = vst.msk [vmem:[%s828 + $0x30] sm:$0xff] %vm1570, %v1647
      %s1704 = smul.u32 7, %s33
      %p1705 = scmp.lt.s32.totalorder %s34, 1
      %s1706 = scalar_select %p1705, %s34, 1
      %p1707 = scmp.lt.s32.totalorder %s1704, 6
      %s1708 = scalar_select %p1707, %s1704, 6
      %s1709 = smul.addr %s1706, 7
      %s1710 = sadd.s32 %s1708, %s1709
      %s1711 = smul.addr %s1710, 8
      %s1712 = scalar_lea.vmem %s14, %s1711
      %s1713 = smul.u32 7, %s33
      %p1714 = scmp.lt.s32.totalorder %s34, 1
      %s1715 = scalar_select %p1714, %s34, 1
      %p1716 = scmp.lt.s32.totalorder %s1713, 6
      %s1717 = scalar_select %p1716, %s1713, 6
      %s1718 = smul.addr %s1715, 7
      %s1719 = sadd.s32 %s1717, %s1718
      %s1720 = smul.addr %s1719, 8
      %s1721 = scalar_lea.vmem %s15, %s1720
      %s1722 = smul.u32 7, %s33
      %p1723 = scmp.lt.s32.totalorder %s34, 1
      %s1724 = scalar_select %p1723, %s34, 1
      %p1725 = scmp.lt.s32.totalorder %s1722, 6
      %s1726 = scalar_select %p1725, %s1722, 6
      %s1727 = smul.addr %s1724, 7
      %s1728 = sadd.s32 %s1726, %s1727
      %s1729 = smul.addr %s1728, 8
      %s1730 = scalar_lea.vmem %s16, %s1729
      %s1731 = smul.u32 7, %s33
      %p1732 = scmp.lt.s32.totalorder %s34, 1
      %s1733 = scalar_select %p1732, %s34, 1
      %p1734 = scmp.lt.s32.totalorder %s1731, 6
      %s1735 = scalar_select %p1734, %s1731, 6
      %s1736 = smul.addr %s1733, 7
      %s1737 = sadd.s32 %s1735, %s1736
      %s1738 = smul.addr %s1737, 8
      %s1739 = scalar_lea.vmem %s17, %s1738
      // Predicated region
      $region77: #{tpu_custom_call.1} parent=75 // pred_check
        %p1740 = pneg %p409
      $region78: #{tpu_custom_call.1} parent=75 // pred_check_branch
        %1742 = sbr.rel (%p1740) target = $region80
      $region79: #{tpu_custom_call.1} parent=75 // pred_region
        %s1743 = smul.u32 7, %s33
      $region80: #{tpu_custom_call.1} parent=75 // pred_fallthru
        _
      // Predicated region
      $region81: #{tpu_custom_call.1} parent=75 // pred_check
        %p1744 = pneg %p437
      $region82: #{tpu_custom_call.1} parent=75 // pred_check_branch
        %1746 = sbr.rel (%p1744) target = $region84
      $region83: #{tpu_custom_call.1} parent=75 // pred_region
        %s1747 = smul.u32 7, %s33
      $region84: #{tpu_custom_call.1} parent=75 // pred_fallthru
        _
      // Predicated region
      $region85: #{tpu_custom_call.1} parent=75 // pred_check
        %p1748 = pneg %p465
      $region86: #{tpu_custom_call.1} parent=75 // pred_check_branch
        %1750 = sbr.rel (%p1748) target = $region88
      $region87: #{tpu_custom_call.1} parent=75 // pred_region
        %s1751 = smul.u32 7, %s33
      $region88: #{tpu_custom_call.1} parent=75 // pred_fallthru
        _
      // Predicated region
      $region89: #{tpu_custom_call.1} parent=75 // pred_check
        %p1752 = pneg %p493
      $region90: #{tpu_custom_call.1} parent=75 // pred_check_branch
        %1754 = sbr.rel (%p1752) target = $region92
      $region91: #{tpu_custom_call.1} parent=75 // pred_region
        %s1755 = smul.u32 7, %s33
      $region92: #{tpu_custom_call.1} parent=75 // pred_fallthru
        _
    $region76: #{tpu_custom_call.1} parent=5 // pred_fallthru
      _
    %p1756 = scmp.le.s32.totalorder 2, %s24
    // Predicated region
    $region93: #{tpu_custom_call.1} parent=5 // pred_check
      %p1757 = pneg %p1756
    $region94: #{tpu_custom_call.1} parent=5 // pred_check_branch
      %1759 = sbr.rel (%p1757) target = $region96
    $region95: #{tpu_custom_call.1} parent=5 // pred_region
      %s1760 = ssub.s32 %s24, 2
      // Predicated region
      $region97: #{tpu_custom_call.1} parent=95 // pred_check
        %p1761 = pneg %p415
      $region98: #{tpu_custom_call.1} parent=95 // pred_check_branch
        %1763 = sbr.rel (%p1761) target = $region100
      $region99: #{tpu_custom_call.1} parent=95 // pred_region
        %s1764 = smul.u32 7, %s35
        %p1765 = scmp.lt.s32.totalorder %s36, 1
        %s1766 = scalar_select %p1765, %s36, 1
        %p1767 = scmp.lt.s32.totalorder %s1764, 6
        %s1768 = scalar_select %p1767, %s1764, 6
        %s1769 = smul.addr %s1766, 7
        %s1770 = sadd.s32 %s1768, %s1769
        %s1771 = smul.addr %s1770, 8
        %s1772 = scalar_lea.vmem %s14, %s1771
      $region100: #{tpu_custom_call.1} parent=95 // pred_fallthru
        _
      // Predicated region
      $region101: #{tpu_custom_call.1} parent=95 // pred_check
        %p1773 = pneg %p443
      $region102: #{tpu_custom_call.1} parent=95 // pred_check_branch
        %1775 = sbr.rel (%p1773) target = $region104
      $region103: #{tpu_custom_call.1} parent=95 // pred_region
        %s1776 = smul.u32 7, %s35
        %p1777 = scmp.lt.s32.totalorder %s36, 1
        %s1778 = scalar_select %p1777, %s36, 1
        %p1779 = scmp.lt.s32.totalorder %s1776, 6
        %s1780 = scalar_select %p1779, %s1776, 6
        %s1781 = smul.addr %s1778, 7
        %s1782 = sadd.s32 %s1780, %s1781
        %s1783 = smul.addr %s1782, 8
        %s1784 = scalar_lea.vmem %s15, %s1783
      $region104: #{tpu_custom_call.1} parent=95 // pred_fallthru
        _
      // Predicated region
      $region105: #{tpu_custom_call.1} parent=95 // pred_check
        %p1785 = pneg %p471
      $region106: #{tpu_custom_call.1} parent=95 // pred_check_branch
        %1787 = sbr.rel (%p1785) target = $region108
      $region107: #{tpu_custom_call.1} parent=95 // pred_region
        %s1788 = smul.u32 7, %s35
        %p1789 = scmp.lt.s32.totalorder %s36, 1
        %s1790 = scalar_select %p1789, %s36, 1
        %p1791 = scmp.lt.s32.totalorder %s1788, 6
        %s1792 = scalar_select %p1791, %s1788, 6
        %s1793 = smul.addr %s1790, 7
        %s1794 = sadd.s32 %s1792, %s1793
        %s1795 = smul.addr %s1794, 8
        %s1796 = scalar_lea.vmem %s16, %s1795
      $region108: #{tpu_custom_call.1} parent=95 // pred_fallthru
        _
      // Predicated region
      $region109: #{tpu_custom_call.1} parent=95 // pred_check
        %p1797 = pneg %p499
      $region110: #{tpu_custom_call.1} parent=95 // pred_check_branch
        %1799 = sbr.rel (%p1797) target = $region112
      $region111: #{tpu_custom_call.1} parent=95 // pred_region
        %s1800 = smul.u32 7, %s35
        %p1801 = scmp.lt.s32.totalorder %s36, 1
        %s1802 = scalar_select %p1801, %s36, 1
        %p1803 = scmp.lt.s32.totalorder %s1800, 6
        %s1804 = scalar_select %p1803, %s1800, 6
        %s1805 = smul.addr %s1802, 7
        %s1806 = sadd.s32 %s1804, %s1805
        %s1807 = smul.addr %s1806, 8
        %s1808 = scalar_lea.vmem %s17, %s1807
      $region112: #{tpu_custom_call.1} parent=95 // pred_fallthru
        _
    $region96: #{tpu_custom_call.1} parent=5 // pred_fallthru
      _
  $region6: #{tpu_custom_call.1} parent=0 // loop_footer
    %s28 = sadd.s32 1, %s24
  $region7: #{tpu_custom_call.1} parent=0 // loop_footer_branch
    %23 = sbr.rel target = $region3
  $region8: #{tpu_custom_call.1} parent=0 // loop_exit
    _

</llo_original>
